<compile_context>
chip_gen: v7x
topology: tpu7x:2x2x1
jax: 0.10.0
libtpu: 0.0.40
codegen_flags: <defaults>
</compile_context>

<pallas_src>
import functools

import jax
import jax.numpy as jnp
import numpy as np
from jax.experimental import pallas as pl
from jax.experimental.pallas import tpu as pltpu


def _moe_topx_kernel(x_ref, w_ref, b_ref, c_ref, o_ref, *, num_experts, d_out):
    """One token-tile grid step; all experts computed in a single MXU matmul.

    x_ref: (tT, d_in)        bf16 token tile
    w_ref: (d_in, E*d_out)   bf16 expert weights packed along N (VMEM-resident)
    b_ref: (1, E*d_out)      f32 packed biases
    c_ref: (tT, E)           f32 dense combine weights for this tile
    o_ref: (tT, d_out)       f32 output tile
    """
    # One wide matmul: bf16 operands, f32 accumulation.  E*d_out lanes fill the
    # 256-wide MXU on v6e/v7x instead of E half-width matmuls.
    h = jnp.dot(x_ref[...], w_ref[...], preferred_element_type=jnp.float32)
    h = jnp.maximum(h + b_ref[...], 0.0)          # bias + ReLU (f32 epilogue)

    c = c_ref[...]                                # (tT, E) combine weights
    acc = jnp.zeros(o_ref.shape, jnp.float32)
    # Static unroll over experts (E small & static); every slice below is a
    # 128-lane-aligned static slice -> no cross-lane data movement.
    for e in range(num_experts):
        he = h[:, e * d_out:(e + 1) * d_out]
        m = jnp.max(he, axis=-1, keepdims=True)
        p = jnp.exp(he - m)                       # EUP
        y = p * pl.reciprocal(jnp.sum(p, axis=-1, keepdims=True), approx=True)
        acc = acc + c[:, e:e + 1] * y             # combine column e (static)
    o_ref[...] = acc


def prepare_expert_params(expert_w, expert_b):
    """One-time packing/cast, outside the per-call jitted path.

    (E, d_in, d_out) f32 -> (d_in, E*d_out) bf16  (experts packed along N)
    (E, d_out)       f32 -> (1, E*d_out)    f32
    """
    E, d_in, d_out = expert_w.shape
    w_packed = jnp.transpose(expert_w, (1, 0, 2)).reshape(d_in, E * d_out)
    w_packed = w_packed.astype(jnp.bfloat16)
    b_packed = expert_b.reshape(1, E * d_out).astype(jnp.float32)
    return w_packed, b_packed


@functools.partial(jax.jit, static_argnames=("top_x", "token_tile"))
def moe_topx_forward(x, gate_w, gate_b, w_packed, b_packed, *, top_x=2,
                     token_tile=256):
    T, d_in = x.shape
    E = gate_w.shape[1]
    d_out = w_packed.shape[1] // E
    assert T % token_tile == 0, "pad the token count to a multiple of token_tile"
    num_tiles = T // token_tile

    # ---- gating glue (plain JAX, cheap, f32) --------------------------------
    logits = x @ gate_w + gate_b                       # (T, E)
    top_w, top_idx = jax.lax.top_k(logits, top_x)      # (T, top_x)
    top_w = jax.nn.softmax(top_w, axis=-1)             # get_weights_of_top_experts
    top_w = jax.nn.softmax(top_w, axis=-1)             # second softmax (as in torch code)
    combine = jnp.zeros((T, E), jnp.float32).at[
        jnp.arange(T)[:, None], top_idx].add(top_w)    # dense (T, E) combine

    x_bf = x.astype(jnp.bfloat16)                      # bf16 MXU operand

    kernel = functools.partial(_moe_topx_kernel, num_experts=E, d_out=d_out)
    out = pl.pallas_call(
        kernel,
        out_shape=jax.ShapeDtypeStruct((T, d_out), jnp.float32),
        grid=(num_tiles,),
        in_specs=[
            pl.BlockSpec((token_tile, d_in), lambda i: (i, 0)),
            # constant block index -> weight stack DMA'd once, stays resident
            pl.BlockSpec((d_in, E * d_out), lambda i: (0, 0)),
            pl.BlockSpec((1, E * d_out), lambda i: (0, 0)),
            pl.BlockSpec((token_tile, E), lambda i: (i, 0)),
        ],
        out_specs=pl.BlockSpec((token_tile, d_out), lambda i: (i, 0)),
        compiler_params=pltpu.CompilerParams(
            dimension_semantics=("parallel",),         # megacore over token tiles
        ),
    )(x_bf, w_packed, b_packed, combine)
    return out


def reference_moe_topx(x, gate_w, gate_b, expert_w, expert_b, top_x=2):
    """Pure-JAX f32 mirror of the PyTorch forward (dense formulation)."""
    logits = x @ gate_w + gate_b
    top_w, top_idx = jax.lax.top_k(logits, top_x)
    top_w = jax.nn.softmax(jax.nn.softmax(top_w, axis=-1), axis=-1)
    h = jnp.einsum("td,edo->teo", x, expert_w) + expert_b[None]
    y = jax.nn.softmax(jnp.maximum(h, 0.0), axis=-1)      # (T, E, D_out)
    out = jnp.zeros((x.shape[0], expert_w.shape[-1]), jnp.float32)
    for k in range(top_x):
        yk = jnp.take_along_axis(y, top_idx[:, k][:, None, None], axis=1)[:, 0]
        out = out + top_w[:, k:k + 1] * yk
    return out


if __name__ == "__main__":
    # Lane-dense demo: 512 tokens, in/out dim 128, 4 experts, top-2.
    T, D_IN, D_OUT, E, TOP_X = 512, 128, 128, 4, 2
    TOKEN_TILE = 256   # 2 tiles -> the parallel axis can use both v7x TCs

    key = jax.random.PRNGKey(0)
    kx, kgw, kgb, kew, keb = jax.random.split(key, 5)

    x = jax.random.normal(kx, (T, D_IN), jnp.float32)
    # gate: nn.Linear(D_IN, E)
    gate_w = jax.random.normal(kgw, (D_IN, E), jnp.float32) * 0.1
    gate_b = jax.random.normal(kgb, (E,), jnp.float32) * 0.1
    # experts: E x nn.Linear(D_IN, D_OUT)  (ReLU + Dropout(0.02, eval) + softmax)
    expert_w = jax.random.normal(kew, (E, D_IN, D_OUT), jnp.float32) * 0.1
    expert_b = jax.random.normal(keb, (E, D_OUT), jnp.float32) * 0.1

    # One-time bf16 cast + N-packing, outside the jitted per-call path.
    w_packed, b_packed = prepare_expert_params(expert_w, expert_b)

    out = moe_topx_forward(x, gate_w, gate_b, w_packed, b_packed,
                           top_x=TOP_X, token_tile=TOKEN_TILE)
    out = jax.block_until_ready(out)

    ref = reference_moe_topx(x, gate_w, gate_b, expert_w, expert_b, top_x=TOP_X)
    # bf16 MXU operands + approximate reciprocal => relaxed tolerance vs f32 ref.
    np.testing.assert_allclose(np.asarray(out), np.asarray(ref),
                               rtol=5e-2, atol=2e-3)
    print("KERNEL_OK")
</pallas_src>

<mosaic_0001>
module attributes {stable_mosaic.version = 11 : i64} {
  func.func private @main(%arg0: i32) attributes {dimension_semantics = [#tpu.dimension_semantics<core_parallel>], iteration_bounds = array<i64: 2>, tpu.core_type = #tpu.core_type<sc_scalar_subcore>, window_params = []} {
    return
  }
}

module attributes {stable_mosaic.version = 11 : i64} {
  func.func private @main(%arg0: i32) attributes {dimension_semantics = [#tpu.dimension_semantics<core_parallel>], iteration_bounds = array<i64: 2>, tpu.core_type = #tpu.core_type<sc_scalar_subcore>, window_params = []} {
    return
  }
}

module attributes {stable_mosaic.version = 11 : i64} {
  func.func @_moe_topx_kernel(%arg0: i32, %arg1: memref<256x128xbf16, #tpu.memory_space<vmem>>, %arg2: memref<128x512xbf16, #tpu.memory_space<vmem>>, %arg3: memref<1x512xf32, #tpu.memory_space<vmem>>, %arg4: memref<256x4xf32, #tpu.memory_space<vmem>>, %arg5: memref<256x128xf32, #tpu.memory_space<vmem>>) attributes {dimension_semantics = [#tpu.dimension_semantics<parallel>], iteration_bounds = array<i64: 2>, scalar_prefetch = 0 : i64, scratch_operands = 0 : i64, tpu.core_type = #tpu.core_type<tc>, window_params = [{transform_indices = @transform_0, window_bounds = array<i64: 256, 128>}, {pipeline_mode = #tpu.pipeline_mode<synchronous>, transform_indices = @transform_1, window_bounds = array<i64: 128, 512>}, {pipeline_mode = #tpu.pipeline_mode<synchronous>, transform_indices = @transform_2, window_bounds = array<i64: 1, 512>}, {transform_indices = @transform_3, window_bounds = array<i64: 256, 4>}, {transform_indices = @transform_4, window_bounds = array<i64: 256, 128>}]} {
    %c0 = arith.constant 0 : index
    %c0_0 = arith.constant 0 : index
    %0 = vector.load %arg1[%c0, %c0_0] : memref<256x128xbf16, #tpu.memory_space<vmem>>, vector<256x128xbf16>
    %c0_1 = arith.constant 0 : index
    %c0_2 = arith.constant 0 : index
    %1 = vector.load %arg2[%c0_1, %c0_2] : memref<128x512xbf16, #tpu.memory_space<vmem>>, vector<128x512xbf16>
    %cst = arith.constant dense<0.000000e+00> : vector<256x512xf32>
    %2 = tpu.matmul %0, %1, %cst {dimension_numbers = #tpu.dot_dimension_numbers<[1], [0], [0], [1], [0, 0, 1, 1], [], []>} : vector<256x128xbf16>, vector<128x512xbf16>, vector<256x512xf32> -> vector<256x512xf32>
    %c0_3 = arith.constant 0 : index
    %c0_4 = arith.constant 0 : index
    %3 = vector.load %arg3[%c0_3, %c0_4] : memref<1x512xf32, #tpu.memory_space<vmem>>, vector<1x512xf32>
    %4 = vector.broadcast %3 : vector<1x512xf32> to vector<256x512xf32>
    %5 = arith.addf %2, %4 : vector<256x512xf32>
    %cst_5 = arith.constant 0.000000e+00 : f32
    %6 = vector.broadcast %cst_5 : f32 to vector<256x512xf32>
    %7 = arith.maximumf %5, %6 : vector<256x512xf32>
    %c0_6 = arith.constant 0 : index
    %c0_7 = arith.constant 0 : index
    %8 = vector.load %arg4[%c0_6, %c0_7] : memref<256x4xf32, #tpu.memory_space<vmem>>, vector<256x4xf32>
    %cst_8 = arith.constant 0.000000e+00 : f32
    %9 = vector.broadcast %cst_8 : f32 to vector<256x128xf32>
    %10 = vector.extract_strided_slice %7 {offsets = [0, 0], sizes = [256, 128], strides = [1, 1]} : vector<256x512xf32> to vector<256x128xf32>
    %cst_9 = arith.constant dense<0xFF800000> : vector<256xf32>
    %11 = vector.multi_reduction <maximumf>, %10, %cst_9 [1] : vector<256x128xf32> to vector<256xf32>
    %12 = vector.shape_cast %11 : vector<256xf32> to vector<256x1xf32>
    %13 = vector.broadcast %12 : vector<256x1xf32> to vector<256x128xf32>
    %14 = arith.subf %10, %13 : vector<256x128xf32>
    %15 = math.exp %14 : vector<256x128xf32>
    %cst_10 = arith.constant dense<0.000000e+00> : vector<256xf32>
    %16 = vector.multi_reduction <add>, %15, %cst_10 [1] : vector<256x128xf32> to vector<256xf32>
    %17 = vector.shape_cast %16 : vector<256xf32> to vector<256x1xf32>
    %18 = tpu.reciprocal %17 {approx = true} : vector<256x1xf32> -> vector<256x1xf32>
    %19 = vector.broadcast %18 : vector<256x1xf32> to vector<256x128xf32>
    %20 = arith.mulf %15, %19 : vector<256x128xf32>
    %21 = vector.extract_strided_slice %8 {offsets = [0, 0], sizes = [256, 1], strides = [1, 1]} : vector<256x4xf32> to vector<256x1xf32>
    %22 = vector.broadcast %21 : vector<256x1xf32> to vector<256x128xf32>
    %23 = arith.mulf %22, %20 : vector<256x128xf32>
    %24 = arith.addf %9, %23 : vector<256x128xf32>
    %25 = vector.extract_strided_slice %7 {offsets = [0, 128], sizes = [256, 128], strides = [1, 1]} : vector<256x512xf32> to vector<256x128xf32>
    %cst_11 = arith.constant dense<0xFF800000> : vector<256xf32>
    %26 = vector.multi_reduction <maximumf>, %25, %cst_11 [1] : vector<256x128xf32> to vector<256xf32>
    %27 = vector.shape_cast %26 : vector<256xf32> to vector<256x1xf32>
    %28 = vector.broadcast %27 : vector<256x1xf32> to vector<256x128xf32>
    %29 = arith.subf %25, %28 : vector<256x128xf32>
    %30 = math.exp %29 : vector<256x128xf32>
    %cst_12 = arith.constant dense<0.000000e+00> : vector<256xf32>
    %31 = vector.multi_reduction <add>, %30, %cst_12 [1] : vector<256x128xf32> to vector<256xf32>
    %32 = vector.shape_cast %31 : vector<256xf32> to vector<256x1xf32>
    %33 = tpu.reciprocal %32 {approx = true} : vector<256x1xf32> -> vector<256x1xf32>
    %34 = vector.broadcast %33 : vector<256x1xf32> to vector<256x128xf32>
    %35 = arith.mulf %30, %34 : vector<256x128xf32>
    %36 = vector.extract_strided_slice %8 {offsets = [0, 1], sizes = [256, 1], strides = [1, 1]} : vector<256x4xf32> to vector<256x1xf32>
    %37 = vector.broadcast %36 : vector<256x1xf32> to vector<256x128xf32>
    %38 = arith.mulf %37, %35 : vector<256x128xf32>
    %39 = arith.addf %24, %38 : vector<256x128xf32>
    %40 = vector.extract_strided_slice %7 {offsets = [0, 256], sizes = [256, 128], strides = [1, 1]} : vector<256x512xf32> to vector<256x128xf32>
    %cst_13 = arith.constant dense<0xFF800000> : vector<256xf32>
    %41 = vector.multi_reduction <maximumf>, %40, %cst_13 [1] : vector<256x128xf32> to vector<256xf32>
    %42 = vector.shape_cast %41 : vector<256xf32> to vector<256x1xf32>
    %43 = vector.broadcast %42 : vector<256x1xf32> to vector<256x128xf32>
    %44 = arith.subf %40, %43 : vector<256x128xf32>
    %45 = math.exp %44 : vector<256x128xf32>
    %cst_14 = arith.constant dense<0.000000e+00> : vector<256xf32>
    %46 = vector.multi_reduction <add>, %45, %cst_14 [1] : vector<256x128xf32> to vector<256xf32>
    %47 = vector.shape_cast %46 : vector<256xf32> to vector<256x1xf32>
    %48 = tpu.reciprocal %47 {approx = true} : vector<256x1xf32> -> vector<256x1xf32>
    %49 = vector.broadcast %48 : vector<256x1xf32> to vector<256x128xf32>
    %50 = arith.mulf %45, %49 : vector<256x128xf32>
    %51 = vector.extract_strided_slice %8 {offsets = [0, 2], sizes = [256, 1], strides = [1, 1]} : vector<256x4xf32> to vector<256x1xf32>
    %52 = vector.broadcast %51 : vector<256x1xf32> to vector<256x128xf32>
    %53 = arith.mulf %52, %50 : vector<256x128xf32>
    %54 = arith.addf %39, %53 : vector<256x128xf32>
    %55 = vector.extract_strided_slice %7 {offsets = [0, 384], sizes = [256, 128], strides = [1, 1]} : vector<256x512xf32> to vector<256x128xf32>
    %cst_15 = arith.constant dense<0xFF800000> : vector<256xf32>
    %56 = vector.multi_reduction <maximumf>, %55, %cst_15 [1] : vector<256x128xf32> to vector<256xf32>
    %57 = vector.shape_cast %56 : vector<256xf32> to vector<256x1xf32>
    %58 = vector.broadcast %57 : vector<256x1xf32> to vector<256x128xf32>
    %59 = arith.subf %55, %58 : vector<256x128xf32>
    %60 = math.exp %59 : vector<256x128xf32>
    %cst_16 = arith.constant dense<0.000000e+00> : vector<256xf32>
    %61 = vector.multi_reduction <add>, %60, %cst_16 [1] : vector<256x128xf32> to vector<256xf32>
    %62 = vector.shape_cast %61 : vector<256xf32> to vector<256x1xf32>
    %63 = tpu.reciprocal %62 {approx = true} : vector<256x1xf32> -> vector<256x1xf32>
    %64 = vector.broadcast %63 : vector<256x1xf32> to vector<256x128xf32>
    %65 = arith.mulf %60, %64 : vector<256x128xf32>
    %66 = vector.extract_strided_slice %8 {offsets = [0, 3], sizes = [256, 1], strides = [1, 1]} : vector<256x4xf32> to vector<256x1xf32>
    %67 = vector.broadcast %66 : vector<256x1xf32> to vector<256x128xf32>
    %68 = arith.mulf %67, %65 : vector<256x128xf32>
    %69 = arith.addf %54, %68 : vector<256x128xf32>
    %c0_17 = arith.constant 0 : index
    %c0_18 = arith.constant 0 : index
    %70 = vector.load %arg5[%c0_17, %c0_18] : memref<256x128xf32, #tpu.memory_space<vmem>>, vector<256x128xf32>
    tpu.vector_store %arg5[%c0_17, %c0_18], %69 {strides = array<i32>} : memref<256x128xf32, #tpu.memory_space<vmem>>, vector<256x128xf32>,
    return
  }
  func.func @transform_0(%arg0: i32) -> (i32, i32) {
    %c0_i32 = arith.constant 0 : i32
    %c0_i32_0 = arith.constant 0 : i32
    return %arg0, %c0_i32 : i32, i32
  }
  func.func @transform_1(%arg0: i32) -> (i32, i32) {
    %c0_i32 = arith.constant 0 : i32
    %c0_i32_0 = arith.constant 0 : i32
    %c0_i32_1 = arith.constant 0 : i32
    return %c0_i32, %c0_i32_0 : i32, i32
  }
  func.func @transform_2(%arg0: i32) -> (i32, i32) {
    %c0_i32 = arith.constant 0 : i32
    %c0_i32_0 = arith.constant 0 : i32
    %c0_i32_1 = arith.constant 0 : i32
    return %c0_i32, %c0_i32_0 : i32, i32
  }
  func.func @transform_3(%arg0: i32) -> (i32, i32) {
    %c0_i32 = arith.constant 0 : i32
    %c0_i32_0 = arith.constant 0 : i32
    return %arg0, %c0_i32 : i32, i32
  }
  func.func @transform_4(%arg0: i32) -> (i32, i32) {
    %c0_i32 = arith.constant 0 : i32
    %c0_i32_0 = arith.constant 0 : i32
    return %arg0, %c0_i32 : i32, i32
  }
}

</mosaic_0001>

<llo_original>
// kernel: moe_topx_forward.1
$region0: #{moe_topx_forward.1}
  #allocation0 [shape = 'u32[]', space=smem, size = 0x4, offset = 0x4, fixed_abs, tag = 'smem constant byte address 0x4 - core index']
  #allocation1 [shape = 'u32[144,128]{1,0:T(1,128)}', space=vmem, size = 0x12000, scoped, tag = 'internal scratch']
  %s0 = inlined_call_operand.vmem [shape: bf16[512,128], index: 0, kind: input, shape index: {}]
  %s1 = inlined_call_operand.vmem [shape: bf16[128,512], index: 1, kind: input, shape index: {}]
  %s2 = inlined_call_operand.vmem [shape: f32[1,512], index: 2, kind: input, shape index: {}]
  %s3 = inlined_call_operand.vmem [shape: f32[512,4], index: 3, kind: input, shape index: {}]
  %s4 = inlined_call_operand.hbm [shape: f32[512,128], index: 4, kind: output, shape index: {}]
  %s5 = sld [smem:[#allocation0]]
  $region49: #{moe_topx_forward.1} parent=0
    _
  %s7 = ssub.s32 1, %s5
  %s8 = scalar_select 0, %s7, %s5
  $region1: #{moe_topx_forward.1} parent=0
    #allocation2 [shape = 'u8[262144]{0}', space=vmem, size = 0x40000, scoped, tag = 'output window, operand 0']
    #allocation3 [shape = 's32[2]{0}', space=sflag, size = 0x8, scoped, tag = 'scoped memory for moe_topx_forward.1']
    %9 = vsyncpa [#allocation3], 0
    %s10 = scalar_lea.sflag [#allocation3], 1
    %11 = vsyncpa %s10, 0
    loop: start=0, step=1, limit=4
    $region2: #{moe_topx_forward.1} parent=1 // loop_pre_header
      _
    $region3: #{moe_topx_forward.1} parent=1 // loop_header
      %s13 = sphi 0, %s17
      %p14 = scmp.ge.s32.totalorder %s13, 4
      %s23 = sphi 0, %s25
      %s26 = sphi 0, %s23
      %s27 = sphi 0, %s26
      %s43 = sphi 0, %s27
      %s47 = sphi 0, %s47
      %s49 = sphi 0, %s47
      %s50 = sphi 0, %s49
      %s64 = sphi 0, %s50
      %s68 = sphi 0, %s68
      %s70 = sphi 0, %s68
      %s71 = sphi 0, %s70
      %s85 = sphi 0, %s71
      %s91 = sphi 0, %s93
      %s94 = sphi 0, %s91
      %s95 = sphi 0, %s94
      %s111 = sphi 0, %s95
      %s117 = sphi 0, %s119
      %s120 = sphi 0, %s117
      %s121 = sphi 0, %s120
      %s137 = sphi 0, %s121
    $region4: #{moe_topx_forward.1} parent=1 // loop_header_branch
      %16 = sbr.rel (%p14) target = $region8
    $region5: #{moe_topx_forward.1} parent=1 // loop_body
      %s18 = ssub.s32 %s13, 1
      %s19 = ssub.s32 %s13, 2
      %s20 = sadd.s32 %s13, 1
      %s21 = ssub.s32 %s13, %s20
      %p22 = scmp.eq.s32.totalorder %s21, 0
      %s24 = sadd.s32 %s23, 1
      %s25 = scalar_select %p22, %s23, %s24
      %p28 = pneg %p22
      %p29 = scmp.eq.s32.totalorder %s13, 1
      %p30 = por %p28, %p29
      %p31 = scmp.ne.s32.totalorder %s23, %s26
      %p32 = scmp.eq.s32.totalorder %s13, 0
      %p33 = por %p31, %p32
      %p34 = scmp.ne.s32.totalorder %s23, %s26
      %p35 = scmp.eq.s32.totalorder %s18, 1
      %p36 = por %p34, %p35
      %p37 = scmp.ne.s32.totalorder %s26, %s27
      %p38 = scmp.eq.s32.totalorder %s18, 0
      %p39 = por %p37, %p38
      %p40 = scmp.ne.s32.totalorder %s26, %s27
      %p41 = scmp.eq.s32.totalorder %s19, 1
      %p42 = por %p40, %p41
      %p44 = scmp.ne.s32.totalorder %s27, %s43
      %p45 = scmp.eq.s32.totalorder %s19, 0
      %p46 = por %p44, %p45
      %s48 = sadd.s32 %s47, 1
      %p51 = scmp.eq.s32.totalorder %s13, 1
      %p52 = scmp.ne.s32.totalorder %s47, %s49
      %p53 = scmp.eq.s32.totalorder %s13, 0
      %p54 = por %p52, %p53
      %p55 = scmp.ne.s32.totalorder %s47, %s49
      %p56 = scmp.eq.s32.totalorder %s18, 1
      %p57 = por %p55, %p56
      %p58 = scmp.ne.s32.totalorder %s49, %s50
      %p59 = scmp.eq.s32.totalorder %s18, 0
      %p60 = por %p58, %p59
      %p61 = scmp.ne.s32.totalorder %s49, %s50
      %p62 = scmp.eq.s32.totalorder %s19, 1
      %p63 = por %p61, %p62
      %p65 = scmp.ne.s32.totalorder %s50, %s64
      %p66 = scmp.eq.s32.totalorder %s19, 0
      %p67 = por %p65, %p66
      %s69 = sadd.s32 %s68, 1
      %p72 = scmp.eq.s32.totalorder %s13, 1
      %p73 = scmp.ne.s32.totalorder %s68, %s70
      %p74 = scmp.eq.s32.totalorder %s13, 0
      %p75 = por %p73, %p74
      %p76 = scmp.ne.s32.totalorder %s68, %s70
      %p77 = scmp.eq.s32.totalorder %s18, 1
      %p78 = por %p76, %p77
      %p79 = scmp.ne.s32.totalorder %s70, %s71
      %p80 = scmp.eq.s32.totalorder %s18, 0
      %p81 = por %p79, %p80
      %p82 = scmp.ne.s32.totalorder %s70, %s71
      %p83 = scmp.eq.s32.totalorder %s19, 1
      %p84 = por %p82, %p83
      %p86 = scmp.ne.s32.totalorder %s71, %s85
      %p87 = scmp.eq.s32.totalorder %s19, 0
      %p88 = por %p86, %p87
      %s89 = ssub.s32 %s13, %s20
      %p90 = scmp.eq.s32.totalorder %s89, 0
      %s92 = sadd.s32 %s91, 1
      %s93 = scalar_select %p90, %s91, %s92
      %p96 = pneg %p90
      %p97 = scmp.eq.s32.totalorder %s13, 1
      %p98 = por %p96, %p97
      %p99 = scmp.ne.s32.totalorder %s91, %s94
      %p100 = scmp.eq.s32.totalorder %s13, 0
      %p101 = por %p99, %p100
      %p102 = scmp.ne.s32.totalorder %s91, %s94
      %p103 = scmp.eq.s32.totalorder %s18, 1
      %p104 = por %p102, %p103
      %p105 = scmp.ne.s32.totalorder %s94, %s95
      %p106 = scmp.eq.s32.totalorder %s18, 0
      %p107 = por %p105, %p106
      %p108 = scmp.ne.s32.totalorder %s94, %s95
      %p109 = scmp.eq.s32.totalorder %s19, 1
      %p110 = por %p108, %p109
      %p112 = scmp.ne.s32.totalorder %s95, %s111
      %p113 = scmp.eq.s32.totalorder %s19, 0
      %p114 = por %p112, %p113
      %s115 = ssub.s32 %s13, %s20
      %p116 = scmp.eq.s32.totalorder %s115, 0
      %s118 = sadd.s32 %s117, 1
      %s119 = scalar_select %p116, %s117, %s118
      %p122 = pneg %p116
      %p123 = scmp.eq.s32.totalorder %s13, 1
      %p124 = por %p122, %p123
      %p125 = scmp.ne.s32.totalorder %s117, %s120
      %p126 = scmp.eq.s32.totalorder %s13, 0
      %p127 = por %p125, %p126
      %p128 = scmp.ne.s32.totalorder %s117, %s120
      %p129 = scmp.eq.s32.totalorder %s18, 1
      %p130 = por %p128, %p129
      %p131 = scmp.ne.s32.totalorder %s120, %s121
      %p132 = scmp.eq.s32.totalorder %s18, 0
      %p133 = por %p131, %p132
      %p134 = scmp.ne.s32.totalorder %s120, %s121
      %p135 = scmp.eq.s32.totalorder %s19, 1
      %p136 = por %p134, %p135
      %p138 = scmp.ne.s32.totalorder %s121, %s137
      %p139 = scmp.eq.s32.totalorder %s19, 0
      %p140 = por %p138, %p139
      %p141 = scmp.le.s32.totalorder 1, %s13
      %p142 = scmp.lt.s32.totalorder %s13, 3
      %p143 = pnand %p141, %p142
      %p144 = pneg %p143
      // Predicated region
      $region9: #{moe_topx_forward.1} parent=5 // pred_check
        _
      $region10: #{moe_topx_forward.1} parent=5 // pred_check_branch
        %146 = sbr.rel (%p143) target = $region12
      $region11: #{moe_topx_forward.1} parent=5 // pred_region
        %s147 = ssub.s32 %s13, 1
        // Predicated region
        $region13: #{moe_topx_forward.1} parent=11 // pred_check
          %p148 = pneg %p60
        $region14: #{moe_topx_forward.1} parent=11 // pred_check_branch
          %150 = sbr.rel (%p148) target = $region16
        $region15: #{moe_topx_forward.1} parent=11 // pred_region
          _
        $region16: #{moe_topx_forward.1} parent=11 // pred_fallthru
          _
        // Predicated region
        $region17: #{moe_topx_forward.1} parent=11 // pred_check
          %p151 = pneg %p81
        $region18: #{moe_topx_forward.1} parent=11 // pred_check_branch
          %153 = sbr.rel (%p151) target = $region20
        $region19: #{moe_topx_forward.1} parent=11 // pred_region
          _
        $region20: #{moe_topx_forward.1} parent=11 // pred_fallthru
          _
      $region12: #{moe_topx_forward.1} parent=5 // pred_fallthru
        _
      %p154 = scmp.lt.s32.totalorder %s13, 2
      // Predicated region
      $region21: #{moe_topx_forward.1} parent=5 // pred_check
        %p155 = pneg %p154
      $region22: #{moe_topx_forward.1} parent=5 // pred_check_branch
        %157 = sbr.rel (%p155) target = $region24
      $region23: #{moe_topx_forward.1} parent=5 // pred_region
        // Predicated region
        $region25: #{moe_topx_forward.1} parent=23 // pred_check
          %p158 = pneg %p33
        $region26: #{moe_topx_forward.1} parent=23 // pred_check_branch
          %160 = sbr.rel (%p158) target = $region28
        $region27: #{moe_topx_forward.1} parent=23 // pred_region
          %s161 = smul.u32 32, %s13
          %p162 = scmp.lt.s32.totalorder %s161, 63
          %s163 = scalar_select %p162, %s161, 63
          %s164 = smul.addr %s163, 4
          %s165 = scalar_lea.vmem %s0, %s164
          %s166 = smul.u32 32, %s13
        $region28: #{moe_topx_forward.1} parent=23 // pred_fallthru
          _
        // Predicated region
        $region29: #{moe_topx_forward.1} parent=23 // pred_check
          %p167 = pneg %p101
        $region30: #{moe_topx_forward.1} parent=23 // pred_check_branch
          %169 = sbr.rel (%p167) target = $region32
        $region31: #{moe_topx_forward.1} parent=23 // pred_region
          %s170 = smul.u32 32, %s13
          %p171 = scmp.lt.s32.totalorder %s170, 63
          %s172 = scalar_select %p171, %s170, 63
          %s173 = smul.addr %s172, 8
          %s174 = scalar_lea.vmem %s3, %s173
          %s175 = smul.u32 32, %s13
        $region32: #{moe_topx_forward.1} parent=23 // pred_fallthru
          _
      $region24: #{moe_topx_forward.1} parent=5 // pred_fallthru
        _
      %p176 = scmp.le.s32.totalorder 1, %s13
      %p177 = scmp.lt.s32.totalorder %s13, 3
      %p178 = pnand %p176, %p177
      %p179 = pneg %p178
      // Predicated region
      $region33: #{moe_topx_forward.1} parent=5 // pred_check
        _
      $region34: #{moe_topx_forward.1} parent=5 // pred_check_branch
        %181 = sbr.rel (%p178) target = $region36
      $region35: #{moe_topx_forward.1} parent=5 // pred_region
        %s182 = ssub.s32 %s13, 1
        %s183 = smul.u32 32, %s18
        %p184 = scmp.lt.s32.totalorder %s183, 63
        %s185 = scalar_select %p184, %s183, 63
        %s186 = smul.addr %s185, 4
        %s187 = scalar_lea.vmem %s0, %s186
        %p188 = pneg %p39
        %p189 = pneg %p36
        %p190 = pneg %p60
        %p191 = pneg %p57
        %p192 = pneg %p81
        %p193 = pneg %p78
        %s194 = smul.u32 32, %s18
        %p195 = scmp.lt.s32.totalorder %s194, 63
        %s196 = scalar_select %p195, %s194, 63
        %s197 = smul.addr %s196, 8
        %s198 = scalar_lea.vmem %s3, %s197
        %p199 = pneg %p107
        %p200 = pneg %p104
        %p201 = pneg %p133
        %p202 = pneg %p130
        %s203 = sand.u32 %s120, 1
        %s204 = scalar_lea.sflag [#allocation3], %s203
        %s205 = sand.u32 %s120, 1
        %s206 = smul.addr %s205, 256
        %s207 = scalar_lea.vmem [#allocation2], %s206
        %s208 = smul.u32 32, %s18
        %p209 = scmp.lt.s32.totalorder %s208, 63
        %s210 = scalar_select %p209, %s208, 63
        %s211 = smul.addr %s210, 4
        %s212 = scalar_lea.vmem %s0, %s211
        %s213 = smul.u32 32, %s18
        %s214 = smul.u32 32, %s18
        %p215 = scmp.lt.s32.totalorder %s214, 63
        %s216 = scalar_select %p215, %s214, 63
        %s217 = smul.addr %s216, 8
        %s218 = scalar_lea.vmem %s3, %s217
        %s219 = smul.u32 32, %s18
        %s220 = smul.u32 32, %s18
        %v222 = vld [vmem:[%s212] sm:$0xf]
        %v223 = vld [vmem:[%s212 + $0x4] sm:$0xf]
        %v224 = vld [vmem:[%s212 + $0x8] sm:$0xf]
        %v225 = vld [vmem:[%s212 + $0xc] sm:$0xf]
        %v226 = vld [vmem:[%s212 + $0x10] sm:$0xf]
        %v227 = vld [vmem:[%s212 + $0x14] sm:$0xf]
        %v228 = vld [vmem:[%s212 + $0x18] sm:$0xf]
        %v229 = vld [vmem:[%s212 + $0x1c] sm:$0xf]
        %v230 = vld [vmem:[%s212 + $0x20] sm:$0xf]
        %v231 = vld [vmem:[%s212 + $0x24] sm:$0xf]
        %v232 = vld [vmem:[%s212 + $0x28] sm:$0xf]
        %v233 = vld [vmem:[%s212 + $0x2c] sm:$0xf]
        %v234 = vld [vmem:[%s212 + $0x30] sm:$0xf]
        %v235 = vld [vmem:[%s212 + $0x34] sm:$0xf]
        %v236 = vld [vmem:[%s212 + $0x38] sm:$0xf]
        %v237 = vld [vmem:[%s212 + $0x3c] sm:$0xf]
        %v238 = vld [vmem:[%s212 + $0x40] sm:$0xf]
        %v239 = vld [vmem:[%s212 + $0x44] sm:$0xf]
        %v240 = vld [vmem:[%s212 + $0x48] sm:$0xf]
        %v241 = vld [vmem:[%s212 + $0x4c] sm:$0xf]
        %v242 = vld [vmem:[%s212 + $0x50] sm:$0xf]
        %v243 = vld [vmem:[%s212 + $0x54] sm:$0xf]
        %v244 = vld [vmem:[%s212 + $0x58] sm:$0xf]
        %v245 = vld [vmem:[%s212 + $0x5c] sm:$0xf]
        %v246 = vld [vmem:[%s212 + $0x60] sm:$0xf]
        %v247 = vld [vmem:[%s212 + $0x64] sm:$0xf]
        %v248 = vld [vmem:[%s212 + $0x68] sm:$0xf]
        %v249 = vld [vmem:[%s212 + $0x6c] sm:$0xf]
        %v250 = vld [vmem:[%s212 + $0x70] sm:$0xf]
        %v251 = vld [vmem:[%s212 + $0x74] sm:$0xf]
        %v252 = vld [vmem:[%s212 + $0x78] sm:$0xf]
        %v253 = vld [vmem:[%s212 + $0x7c] sm:$0xf]
        %v254 = vld [vmem:[%s1] sm:$0xff]
        %v255 = vld [vmem:[%s1 + $0x8] sm:$0xff]
        %v256 = vld [vmem:[%s1 + $0x10] sm:$0xff]
        %v257 = vld [vmem:[%s1 + $0x18] sm:$0xff]
        %v258 = vld [vmem:[%s1 + $0x20] sm:$0xff]
        %v259 = vld [vmem:[%s1 + $0x28] sm:$0xff]
        %v260 = vld [vmem:[%s1 + $0x30] sm:$0xff]
        %v261 = vld [vmem:[%s1 + $0x38] sm:$0xff]
        %v262 = vld [vmem:[%s1 + $0x40] sm:$0xff]
        %v263 = vld [vmem:[%s1 + $0x48] sm:$0xff]
        %v264 = vld [vmem:[%s1 + $0x50] sm:$0xff]
        %v265 = vld [vmem:[%s1 + $0x58] sm:$0xff]
        %v266 = vld [vmem:[%s1 + $0x60] sm:$0xff]
        %v267 = vld [vmem:[%s1 + $0x68] sm:$0xff]
        %v268 = vld [vmem:[%s1 + $0x70] sm:$0xff]
        %v269 = vld [vmem:[%s1 + $0x78] sm:$0xff]
        %v270 = vld [vmem:[%s1 + $0x80] sm:$0xff]
        %v271 = vld [vmem:[%s1 + $0x88] sm:$0xff]
        %v272 = vld [vmem:[%s1 + $0x90] sm:$0xff]
        %v273 = vld [vmem:[%s1 + $0x98] sm:$0xff]
        %v274 = vld [vmem:[%s1 + $0xa0] sm:$0xff]
        %v275 = vld [vmem:[%s1 + $0xa8] sm:$0xff]
        %v276 = vld [vmem:[%s1 + $0xb0] sm:$0xff]
        %v277 = vld [vmem:[%s1 + $0xb8] sm:$0xff]
        %v278 = vld [vmem:[%s1 + $0xc0] sm:$0xff]
        %v279 = vld [vmem:[%s1 + $0xc8] sm:$0xff]
        %v280 = vld [vmem:[%s1 + $0xd0] sm:$0xff]
        %v281 = vld [vmem:[%s1 + $0xd8] sm:$0xff]
        %v282 = vld [vmem:[%s1 + $0xe0] sm:$0xff]
        %v283 = vld [vmem:[%s1 + $0xe8] sm:$0xff]
        %v284 = vld [vmem:[%s1 + $0xf0] sm:$0xff]
        %v285 = vld [vmem:[%s1 + $0xf8] sm:$0xff]
        %v286 = vld [vmem:[%s2] sm:$0xf]
        %v288 = vlaneseq
        %v289 = vshrl.u32 %v288, 7
        %v290 = vsub.s32 0, %v289
        %v291 = vrot.slane %v286, %v290
        %v292 = vlaneseq
        %v293 = vshrl.u32 %v292, 7
        %v294 = vsub.s32 1, %v293
        %v295 = vrot.slane %v286, %v294
        %v296 = vlaneseq
        %v297 = vshrl.u32 %v296, 7
        %v298 = vsub.s32 2, %v297
        %v299 = vrot.slane %v286, %v298
        %v300 = vlaneseq
        %v301 = vshrl.u32 %v300, 7
        %v302 = vsub.s32 3, %v301
        %v303 = vrot.slane %v286, %v302
        %v340 = vunpack.c.l.b16 %v222
        %v341 = vunpack.c.l.b16 %v223
        %v342 = vunpack.c.l.b16 %v224
        %v343 = vunpack.c.l.b16 %v225
        %v344 = vunpack.c.l.b16 %v226
        %v345 = vunpack.c.l.b16 %v227
        %v346 = vunpack.c.l.b16 %v228
        %v347 = vunpack.c.l.b16 %v229
        %v348 = vunpack.c.l.b16 %v230
        %v349 = vunpack.c.l.b16 %v231
        %v350 = vunpack.c.l.b16 %v232
        %v351 = vunpack.c.l.b16 %v233
        %v352 = vunpack.c.l.b16 %v234
        %v353 = vunpack.c.l.b16 %v235
        %v354 = vunpack.c.l.b16 %v236
        %v355 = vunpack.c.l.b16 %v237
        %v356 = vunpack.c.l.b16 %v238
        %v357 = vunpack.c.l.b16 %v239
        %v358 = vunpack.c.l.b16 %v240
        %v359 = vunpack.c.l.b16 %v241
        %v360 = vunpack.c.l.b16 %v242
        %v361 = vunpack.c.l.b16 %v243
        %v362 = vunpack.c.l.b16 %v244
        %v363 = vunpack.c.l.b16 %v245
        %v364 = vunpack.c.l.b16 %v246
        %v365 = vunpack.c.l.b16 %v247
        %v366 = vunpack.c.l.b16 %v248
        %v367 = vunpack.c.l.b16 %v249
        %v368 = vunpack.c.l.b16 %v250
        %v369 = vunpack.c.l.b16 %v251
        %v370 = vunpack.c.l.b16 %v252
        %v371 = vunpack.c.l.b16 %v253
        %v372 = vpack.c.b16 %v341, %v340
        %v373 = vpack.c.b16 %v343, %v342
        %v374 = vpack.c.b16 %v345, %v344
        %v375 = vpack.c.b16 %v347, %v346
        %v376 = vpack.c.b16 %v349, %v348
        %v377 = vpack.c.b16 %v351, %v350
        %v378 = vpack.c.b16 %v353, %v352
        %v379 = vpack.c.b16 %v355, %v354
        %v380 = vpack.c.b16 %v357, %v356
        %v381 = vpack.c.b16 %v359, %v358
        %v382 = vpack.c.b16 %v361, %v360
        %v383 = vpack.c.b16 %v363, %v362
        %v384 = vpack.c.b16 %v365, %v364
        %v385 = vpack.c.b16 %v367, %v366
        %v386 = vpack.c.b16 %v369, %v368
        %v387 = vpack.c.b16 %v371, %v370
        %v436 = vunpack.c.l.b16 %v254
        %v437 = vunpack.c.h.b16 %v254
        %v438 = vunpack.c.l.b16 %v255
        %v439 = vunpack.c.h.b16 %v255
        %v440 = vunpack.c.l.b16 %v256
        %v441 = vunpack.c.h.b16 %v256
        %v442 = vunpack.c.l.b16 %v257
        %v443 = vunpack.c.h.b16 %v257
        %v444 = vunpack.c.l.b16 %v258
        %v445 = vunpack.c.h.b16 %v258
        %v446 = vunpack.c.l.b16 %v259
        %v447 = vunpack.c.h.b16 %v259
        %v448 = vunpack.c.l.b16 %v260
        %v449 = vunpack.c.h.b16 %v260
        %v450 = vunpack.c.l.b16 %v261
        %v451 = vunpack.c.h.b16 %v261
        %v452 = vunpack.c.l.b16 %v262
        %v453 = vunpack.c.h.b16 %v262
        %v454 = vunpack.c.l.b16 %v263
        %v455 = vunpack.c.h.b16 %v263
        %v456 = vunpack.c.l.b16 %v264
        %v457 = vunpack.c.h.b16 %v264
        %v458 = vunpack.c.l.b16 %v265
        %v459 = vunpack.c.h.b16 %v265
        %v460 = vunpack.c.l.b16 %v266
        %v461 = vunpack.c.h.b16 %v266
        %v462 = vunpack.c.l.b16 %v267
        %v463 = vunpack.c.h.b16 %v267
        %v464 = vunpack.c.l.b16 %v268
        %v465 = vunpack.c.h.b16 %v268
        %v466 = vunpack.c.l.b16 %v269
        %v467 = vunpack.c.h.b16 %v269
        %v468 = vunpack.c.l.b16 %v270
        %v469 = vunpack.c.h.b16 %v270
        %v470 = vunpack.c.l.b16 %v271
        %v471 = vunpack.c.h.b16 %v271
        %v472 = vunpack.c.l.b16 %v272
        %v473 = vunpack.c.h.b16 %v272
        %v474 = vunpack.c.l.b16 %v273
        %v475 = vunpack.c.h.b16 %v273
        %v476 = vunpack.c.l.b16 %v274
        %v477 = vunpack.c.h.b16 %v274
        %v478 = vunpack.c.l.b16 %v275
        %v479 = vunpack.c.h.b16 %v275
        %v480 = vunpack.c.l.b16 %v276
        %v481 = vunpack.c.h.b16 %v276
        %v482 = vunpack.c.l.b16 %v277
        %v483 = vunpack.c.h.b16 %v277
        %v484 = vunpack.c.l.b16 %v278
        %v485 = vunpack.c.h.b16 %v278
        %v486 = vunpack.c.l.b16 %v279
        %v487 = vunpack.c.h.b16 %v279
        %v488 = vunpack.c.l.b16 %v280
        %v489 = vunpack.c.h.b16 %v280
        %v490 = vunpack.c.l.b16 %v281
        %v491 = vunpack.c.h.b16 %v281
        %v492 = vunpack.c.l.b16 %v282
        %v493 = vunpack.c.h.b16 %v282
        %v494 = vunpack.c.l.b16 %v283
        %v495 = vunpack.c.h.b16 %v283
        %v496 = vunpack.c.l.b16 %v284
        %v497 = vunpack.c.h.b16 %v284
        %v498 = vunpack.c.l.b16 %v285
        %v499 = vunpack.c.h.b16 %v285
        %v500 = vpack.c.b16 %v440, %v436
        %v501 = vpack.c.b16 %v441, %v437
        %v502 = vpack.c.b16 %v442, %v438
        %v503 = vpack.c.b16 %v443, %v439
        %v504 = vpack.c.b16 %v448, %v444
        %v505 = vpack.c.b16 %v449, %v445
        %v506 = vpack.c.b16 %v450, %v446
        %v507 = vpack.c.b16 %v451, %v447
        %v508 = vpack.c.b16 %v456, %v452
        %v509 = vpack.c.b16 %v457, %v453
        %v510 = vpack.c.b16 %v458, %v454
        %v511 = vpack.c.b16 %v459, %v455
        %v512 = vpack.c.b16 %v464, %v460
        %v513 = vpack.c.b16 %v465, %v461
        %v514 = vpack.c.b16 %v466, %v462
        %v515 = vpack.c.b16 %v467, %v463
        %v516 = vpack.c.b16 %v472, %v468
        %v517 = vpack.c.b16 %v473, %v469
        %v518 = vpack.c.b16 %v474, %v470
        %v519 = vpack.c.b16 %v475, %v471
        %v520 = vpack.c.b16 %v480, %v476
        %v521 = vpack.c.b16 %v481, %v477
        %v522 = vpack.c.b16 %v482, %v478
        %v523 = vpack.c.b16 %v483, %v479
        %v524 = vpack.c.b16 %v488, %v484
        %v525 = vpack.c.b16 %v489, %v485
        %v526 = vpack.c.b16 %v490, %v486
        %v527 = vpack.c.b16 %v491, %v487
        %v528 = vpack.c.b16 %v496, %v492
        %v529 = vpack.c.b16 %v497, %v493
        %v530 = vpack.c.b16 %v498, %v494
        %v531 = vpack.c.b16 %v499, %v495
        %564 = vmatprep.subr.bf16.mxu0 %v501
        %565 = vmatpush1.bf16.msra.mxu0 %v500
        %566 = vmatprep.subr.bf16.mxu0 %v505
        %567 = vmatpush1.bf16.msra.mxu0 %v504
        %568 = vmatprep.subr.bf16.mxu0 %v509
        %569 = vmatpush1.bf16.msra.mxu0 %v508
        %570 = vmatprep.subr.bf16.mxu0 %v513
        %571 = vmatpush1.bf16.msra.mxu0 %v512
        %572 = vmatprep.subr.bf16.mxu0 %v517
        %573 = vmatpush1.bf16.msra.mxu0 %v516
        %574 = vmatprep.subr.bf16.mxu0 %v521
        %575 = vmatpush1.bf16.msra.mxu0 %v520
        %576 = vmatprep.subr.bf16.mxu0 %v525
        %577 = vmatpush1.bf16.msra.mxu0 %v524
        %578 = vmatprep.subr.bf16.mxu0 %v529
        %579 = vmatpush1.bf16.msra.mxu0 %v528
        %580 = vmatprep.subr.bf16.mxu0 0
        %581 = vmatpush1.bf16.msra.mxu0 0
        %582 = vmatprep.subr.bf16.mxu0 0
        %583 = vmatpush1.bf16.msra.mxu0 0
        %584 = vmatprep.subr.bf16.mxu0 0
        %585 = vmatpush1.bf16.msra.mxu0 0
        %586 = vmatprep.subr.bf16.mxu0 0
        %587 = vmatpush1.bf16.msra.mxu0 0
        %588 = vmatprep.subr.bf16.mxu0 0
        %589 = vmatpush1.bf16.msra.mxu0 0
        %590 = vmatprep.subr.bf16.mxu0 0
        %591 = vmatpush1.bf16.msra.mxu0 0
        %592 = vmatprep.subr.bf16.mxu0 0
        %593 = vmatpush1.bf16.msra.mxu0 0
        %594 = vmatprep.subr.bf16.mxu0 0
        %595 = vmatpush1.bf16.msra.mxu0 0
        %596 = vmatprep.mubr.bf16.mxu0 0
        %597 = vmatmul.mubr.bf16.gmra.mrb[0].mxu0 %v372
        %v598 = vpop.f32.mrb[0].mxu0
        %v599 = vadd.f32 %v291, %v598
        %v600 = vpop.f32.mrb[0].mxu0
        %v601 = vadd.f32 %v295, %v600
        %v602 = vpop.f32.mrb[0].mxu0
        %v603 = vadd.f32 %v291, %v602
        %v604 = vpop.f32.mrb[0].mxu0
        %v605 = vadd.f32 %v295, %v604
        %606 = vmatprep.mubr.bf16.mxu0 0
        %607 = vmatmul.mubr.bf16.gmra.mrb[0].mxu0 %v373
        %v608 = vpop.f32.mrb[0].mxu0
        %v609 = vadd.f32 %v291, %v608
        %v610 = vpop.f32.mrb[0].mxu0
        %v611 = vadd.f32 %v295, %v610
        %v612 = vpop.f32.mrb[0].mxu0
        %v613 = vadd.f32 %v291, %v612
        %v614 = vpop.f32.mrb[0].mxu0
        %v615 = vadd.f32 %v295, %v614
        %616 = vmatprep.mubr.bf16.mxu0 0
        %617 = vmatmul.mubr.bf16.gmra.mrb[0].mxu0 %v374
        %v618 = vpop.f32.mrb[0].mxu0
        %v619 = vadd.f32 %v291, %v618
        %v620 = vpop.f32.mrb[0].mxu0
        %v621 = vadd.f32 %v295, %v620
        %v622 = vpop.f32.mrb[0].mxu0
        %v623 = vadd.f32 %v291, %v622
        %v624 = vpop.f32.mrb[0].mxu0
        %v625 = vadd.f32 %v295, %v624
        %626 = vmatprep.mubr.bf16.mxu0 0
        %627 = vmatmul.mubr.bf16.gmra.mrb[0].mxu0 %v375
        %v628 = vpop.f32.mrb[0].mxu0
        %v629 = vadd.f32 %v291, %v628
        %v630 = vpop.f32.mrb[0].mxu0
        %v631 = vadd.f32 %v295, %v630
        %v632 = vpop.f32.mrb[0].mxu0
        %v633 = vadd.f32 %v291, %v632
        %v634 = vpop.f32.mrb[0].mxu0
        %v635 = vadd.f32 %v295, %v634
        %636 = vmatprep.mubr.bf16.mxu0 0
        %637 = vmatmul.mubr.bf16.gmra.mrb[0].mxu0 %v376
        %v638 = vpop.f32.mrb[0].mxu0
        %v639 = vadd.f32 %v291, %v638
        %v640 = vpop.f32.mrb[0].mxu0
        %v641 = vadd.f32 %v295, %v640
        %v642 = vpop.f32.mrb[0].mxu0
        %v643 = vadd.f32 %v291, %v642
        %v644 = vpop.f32.mrb[0].mxu0
        %v645 = vadd.f32 %v295, %v644
        %646 = vmatprep.mubr.bf16.mxu0 0
        %647 = vmatmul.mubr.bf16.gmra.mrb[0].mxu0 %v377
        %v648 = vpop.f32.mrb[0].mxu0
        %v649 = vadd.f32 %v291, %v648
        %v650 = vpop.f32.mrb[0].mxu0
        %v651 = vadd.f32 %v295, %v650
        %v652 = vpop.f32.mrb[0].mxu0
        %v653 = vadd.f32 %v291, %v652
        %v654 = vpop.f32.mrb[0].mxu0
        %v655 = vadd.f32 %v295, %v654
        %656 = vmatprep.mubr.bf16.mxu0 0
        %657 = vmatmul.mubr.bf16.gmra.mrb[0].mxu0 %v378
        %v658 = vpop.f32.mrb[0].mxu0
        %v659 = vadd.f32 %v291, %v658
        %v660 = vpop.f32.mrb[0].mxu0
        %v661 = vadd.f32 %v295, %v660
        %v662 = vpop.f32.mrb[0].mxu0
        %v663 = vadd.f32 %v291, %v662
        %v664 = vpop.f32.mrb[0].mxu0
        %v665 = vadd.f32 %v295, %v664
        %666 = vmatprep.mubr.bf16.mxu0 0
        %667 = vmatmul.mubr.bf16.gmra.mrb[0].mxu0 %v379
        %v668 = vpop.f32.mrb[0].mxu0
        %v669 = vadd.f32 %v291, %v668
        %v670 = vpop.f32.mrb[0].mxu0
        %v671 = vadd.f32 %v295, %v670
        %v672 = vpop.f32.mrb[0].mxu0
        %v673 = vadd.f32 %v291, %v672
        %v674 = vpop.f32.mrb[0].mxu0
        %v675 = vadd.f32 %v295, %v674
        %676 = vmatprep.mubr.bf16.mxu0 0
        %677 = vmatmul.mubr.bf16.gmra.mrb[0].mxu0 %v380
        %v678 = vpop.f32.mrb[0].mxu0
        %v679 = vadd.f32 %v291, %v678
        %v680 = vpop.f32.mrb[0].mxu0
        %v681 = vadd.f32 %v295, %v680
        %v682 = vpop.f32.mrb[0].mxu0
        %v683 = vadd.f32 %v291, %v682
        %v684 = vpop.f32.mrb[0].mxu0
        %v685 = vadd.f32 %v295, %v684
        %686 = vmatprep.mubr.bf16.mxu0 0
        %687 = vmatmul.mubr.bf16.gmra.mrb[0].mxu0 %v381
        %v688 = vpop.f32.mrb[0].mxu0
        %v689 = vadd.f32 %v291, %v688
        %v690 = vpop.f32.mrb[0].mxu0
        %v691 = vadd.f32 %v295, %v690
        %v692 = vpop.f32.mrb[0].mxu0
        %v693 = vadd.f32 %v291, %v692
        %v694 = vpop.f32.mrb[0].mxu0
        %v695 = vadd.f32 %v295, %v694
        %696 = vmatprep.mubr.bf16.mxu0 0
        %697 = vmatmul.mubr.bf16.gmra.mrb[0].mxu0 %v382
        %v698 = vpop.f32.mrb[0].mxu0
        %v699 = vadd.f32 %v291, %v698
        %v700 = vpop.f32.mrb[0].mxu0
        %v701 = vadd.f32 %v295, %v700
        %v702 = vpop.f32.mrb[0].mxu0
        %v703 = vadd.f32 %v291, %v702
        %v704 = vpop.f32.mrb[0].mxu0
        %v705 = vadd.f32 %v295, %v704
        %706 = vmatprep.mubr.bf16.mxu0 0
        %707 = vmatmul.mubr.bf16.gmra.mrb[0].mxu0 %v383
        %v708 = vpop.f32.mrb[0].mxu0
        %v709 = vadd.f32 %v291, %v708
        %v710 = vpop.f32.mrb[0].mxu0
        %v711 = vadd.f32 %v295, %v710
        %v712 = vpop.f32.mrb[0].mxu0
        %v713 = vadd.f32 %v291, %v712
        %v714 = vpop.f32.mrb[0].mxu0
        %v715 = vadd.f32 %v295, %v714
        %716 = vmatprep.mubr.bf16.mxu0 0
        %717 = vmatmul.mubr.bf16.gmra.mrb[0].mxu0 %v384
        %v718 = vpop.f32.mrb[0].mxu0
        %v719 = vadd.f32 %v291, %v718
        %v720 = vpop.f32.mrb[0].mxu0
        %v721 = vadd.f32 %v295, %v720
        %v722 = vpop.f32.mrb[0].mxu0
        %v723 = vadd.f32 %v291, %v722
        %v724 = vpop.f32.mrb[0].mxu0
        %v725 = vadd.f32 %v295, %v724
        %726 = vmatprep.mubr.bf16.mxu0 0
        %727 = vmatmul.mubr.bf16.gmra.mrb[0].mxu0 %v385
        %v728 = vpop.f32.mrb[0].mxu0
        %v729 = vadd.f32 %v291, %v728
        %v730 = vpop.f32.mrb[0].mxu0
        %v731 = vadd.f32 %v295, %v730
        %v732 = vpop.f32.mrb[0].mxu0
        %v733 = vadd.f32 %v291, %v732
        %v734 = vpop.f32.mrb[0].mxu0
        %v735 = vadd.f32 %v295, %v734
        %736 = vmatprep.mubr.bf16.mxu0 0
        %737 = vmatmul.mubr.bf16.gmra.mrb[0].mxu0 %v386
        %v738 = vpop.f32.mrb[0].mxu0
        %v739 = vadd.f32 %v291, %v738
        %v740 = vpop.f32.mrb[0].mxu0
        %v741 = vadd.f32 %v295, %v740
        %v742 = vpop.f32.mrb[0].mxu0
        %v743 = vadd.f32 %v291, %v742
        %v744 = vpop.f32.mrb[0].mxu0
        %v745 = vadd.f32 %v295, %v744
        %746 = vmatprep.mubr.bf16.mxu0 0
        %747 = vmatmul.mubr.bf16.gmra.mrb[0].mxu0 %v387
        %v748 = vpop.f32.mrb[0].mxu0
        %v749 = vadd.f32 %v291, %v748
        %v750 = vpop.f32.mrb[0].mxu0
        %v751 = vadd.f32 %v295, %v750
        %v752 = vpop.f32.mrb[0].mxu0
        %v753 = vadd.f32 %v291, %v752
        %v754 = vpop.f32.mrb[0].mxu0
        %v755 = vadd.f32 %v295, %v754
        %756 = vdwg.mxu0
        %757 = vmatprep.subr.bf16.mxu0 %v503
        %758 = vmatpush1.bf16.msra.mxu0 %v502
        %759 = vmatprep.subr.bf16.mxu0 %v507
        %760 = vmatpush1.bf16.msra.mxu0 %v506
        %761 = vmatprep.subr.bf16.mxu0 %v511
        %762 = vmatpush1.bf16.msra.mxu0 %v510
        %763 = vmatprep.subr.bf16.mxu0 %v515
        %764 = vmatpush1.bf16.msra.mxu0 %v514
        %765 = vmatprep.subr.bf16.mxu0 %v519
        %766 = vmatpush1.bf16.msra.mxu0 %v518
        %767 = vmatprep.subr.bf16.mxu0 %v523
        %768 = vmatpush1.bf16.msra.mxu0 %v522
        %769 = vmatprep.subr.bf16.mxu0 %v527
        %770 = vmatpush1.bf16.msra.mxu0 %v526
        %771 = vmatprep.subr.bf16.mxu0 %v531
        %772 = vmatpush1.bf16.msra.mxu0 %v530
        %773 = vmatprep.subr.bf16.mxu0 0
        %774 = vmatpush1.bf16.msra.mxu0 0
        %775 = vmatprep.subr.bf16.mxu0 0
        %776 = vmatpush1.bf16.msra.mxu0 0
        %777 = vmatprep.subr.bf16.mxu0 0
        %778 = vmatpush1.bf16.msra.mxu0 0
        %779 = vmatprep.subr.bf16.mxu0 0
        %780 = vmatpush1.bf16.msra.mxu0 0
        %781 = vmatprep.subr.bf16.mxu0 0
        %782 = vmatpush1.bf16.msra.mxu0 0
        %783 = vmatprep.subr.bf16.mxu0 0
        %784 = vmatpush1.bf16.msra.mxu0 0
        %785 = vmatprep.subr.bf16.mxu0 0
        %786 = vmatpush1.bf16.msra.mxu0 0
        %787 = vmatprep.subr.bf16.mxu0 0
        %788 = vmatpush1.bf16.msra.mxu0 0
        %789 = vmatprep.mubr.bf16.mxu0 0
        %790 = vmatmul.mubr.bf16.gmra.mrb[0].mxu0 %v372
        %v791 = vpop.f32.mrb[0].mxu0
        %v792 = vadd.f32 %v299, %v791
        %v793 = vpop.f32.mrb[0].mxu0
        %v794 = vadd.f32 %v303, %v793
        %v795 = vpop.f32.mrb[0].mxu0
        %v796 = vadd.f32 %v299, %v795
        %v797 = vpop.f32.mrb[0].mxu0
        %v798 = vadd.f32 %v303, %v797
        %799 = vmatprep.mubr.bf16.mxu0 0
        %800 = vmatmul.mubr.bf16.gmra.mrb[0].mxu0 %v373
        %v801 = vpop.f32.mrb[0].mxu0
        %v802 = vadd.f32 %v299, %v801
        %v803 = vpop.f32.mrb[0].mxu0
        %v804 = vadd.f32 %v303, %v803
        %v805 = vpop.f32.mrb[0].mxu0
        %v806 = vadd.f32 %v299, %v805
        %v807 = vpop.f32.mrb[0].mxu0
        %v808 = vadd.f32 %v303, %v807
        %809 = vmatprep.mubr.bf16.mxu0 0
        %810 = vmatmul.mubr.bf16.gmra.mrb[0].mxu0 %v374
        %v811 = vpop.f32.mrb[0].mxu0
        %v812 = vadd.f32 %v299, %v811
        %v813 = vpop.f32.mrb[0].mxu0
        %v814 = vadd.f32 %v303, %v813
        %v815 = vpop.f32.mrb[0].mxu0
        %v816 = vadd.f32 %v299, %v815
        %v817 = vpop.f32.mrb[0].mxu0
        %v818 = vadd.f32 %v303, %v817
        %819 = vmatprep.mubr.bf16.mxu0 0
        %820 = vmatmul.mubr.bf16.gmra.mrb[0].mxu0 %v375
        %v821 = vpop.f32.mrb[0].mxu0
        %v822 = vadd.f32 %v299, %v821
        %v823 = vpop.f32.mrb[0].mxu0
        %v824 = vadd.f32 %v303, %v823
        %v825 = vpop.f32.mrb[0].mxu0
        %v826 = vadd.f32 %v299, %v825
        %v827 = vpop.f32.mrb[0].mxu0
        %v828 = vadd.f32 %v303, %v827
        %829 = vmatprep.mubr.bf16.mxu0 0
        %830 = vmatmul.mubr.bf16.gmra.mrb[0].mxu0 %v376
        %v831 = vpop.f32.mrb[0].mxu0
        %v832 = vadd.f32 %v299, %v831
        %v833 = vpop.f32.mrb[0].mxu0
        %v834 = vadd.f32 %v303, %v833
        %v835 = vpop.f32.mrb[0].mxu0
        %v836 = vadd.f32 %v299, %v835
        %v837 = vpop.f32.mrb[0].mxu0
        %v838 = vadd.f32 %v303, %v837
        %839 = vmatprep.mubr.bf16.mxu0 0
        %840 = vmatmul.mubr.bf16.gmra.mrb[0].mxu0 %v377
        %v841 = vpop.f32.mrb[0].mxu0
        %v842 = vadd.f32 %v299, %v841
        %v843 = vpop.f32.mrb[0].mxu0
        %v844 = vadd.f32 %v303, %v843
        %v845 = vpop.f32.mrb[0].mxu0
        %v846 = vadd.f32 %v299, %v845
        %v847 = vpop.f32.mrb[0].mxu0
        %v848 = vadd.f32 %v303, %v847
        %849 = vmatprep.mubr.bf16.mxu0 0
        %850 = vmatmul.mubr.bf16.gmra.mrb[0].mxu0 %v378
        %v851 = vpop.f32.mrb[0].mxu0
        %v852 = vadd.f32 %v299, %v851
        %v853 = vpop.f32.mrb[0].mxu0
        %v854 = vadd.f32 %v303, %v853
        %v855 = vpop.f32.mrb[0].mxu0
        %v856 = vadd.f32 %v299, %v855
        %v857 = vpop.f32.mrb[0].mxu0
        %v858 = vadd.f32 %v303, %v857
        %859 = vmatprep.mubr.bf16.mxu0 0
        %860 = vmatmul.mubr.bf16.gmra.mrb[0].mxu0 %v379
        %v861 = vpop.f32.mrb[0].mxu0
        %v862 = vadd.f32 %v299, %v861
        %v863 = vpop.f32.mrb[0].mxu0
        %v864 = vadd.f32 %v303, %v863
        %v865 = vpop.f32.mrb[0].mxu0
        %v866 = vadd.f32 %v299, %v865
        %v867 = vpop.f32.mrb[0].mxu0
        %v868 = vadd.f32 %v303, %v867
        %869 = vmatprep.mubr.bf16.mxu0 0
        %870 = vmatmul.mubr.bf16.gmra.mrb[0].mxu0 %v380
        %v871 = vpop.f32.mrb[0].mxu0
        %v872 = vadd.f32 %v299, %v871
        %v873 = vpop.f32.mrb[0].mxu0
        %v874 = vadd.f32 %v303, %v873
        %v875 = vpop.f32.mrb[0].mxu0
        %v876 = vadd.f32 %v299, %v875
        %v877 = vpop.f32.mrb[0].mxu0
        %v878 = vadd.f32 %v303, %v877
        %879 = vmatprep.mubr.bf16.mxu0 0
        %880 = vmatmul.mubr.bf16.gmra.mrb[0].mxu0 %v381
        %v881 = vpop.f32.mrb[0].mxu0
        %v882 = vadd.f32 %v299, %v881
        %v883 = vpop.f32.mrb[0].mxu0
        %v884 = vadd.f32 %v303, %v883
        %v885 = vpop.f32.mrb[0].mxu0
        %v886 = vadd.f32 %v299, %v885
        %v887 = vpop.f32.mrb[0].mxu0
        %v888 = vadd.f32 %v303, %v887
        %889 = vmatprep.mubr.bf16.mxu0 0
        %890 = vmatmul.mubr.bf16.gmra.mrb[0].mxu0 %v382
        %v891 = vpop.f32.mrb[0].mxu0
        %v892 = vadd.f32 %v299, %v891
        %v893 = vpop.f32.mrb[0].mxu0
        %v894 = vadd.f32 %v303, %v893
        %v895 = vpop.f32.mrb[0].mxu0
        %v896 = vadd.f32 %v299, %v895
        %v897 = vpop.f32.mrb[0].mxu0
        %v898 = vadd.f32 %v303, %v897
        %899 = vmatprep.mubr.bf16.mxu0 0
        %900 = vmatmul.mubr.bf16.gmra.mrb[0].mxu0 %v383
        %v901 = vpop.f32.mrb[0].mxu0
        %v902 = vadd.f32 %v299, %v901
        %v903 = vpop.f32.mrb[0].mxu0
        %v904 = vadd.f32 %v303, %v903
        %v905 = vpop.f32.mrb[0].mxu0
        %v906 = vadd.f32 %v299, %v905
        %v907 = vpop.f32.mrb[0].mxu0
        %v908 = vadd.f32 %v303, %v907
        %909 = vmatprep.mubr.bf16.mxu0 0
        %910 = vmatmul.mubr.bf16.gmra.mrb[0].mxu0 %v384
        %v911 = vpop.f32.mrb[0].mxu0
        %v912 = vadd.f32 %v299, %v911
        %v913 = vpop.f32.mrb[0].mxu0
        %v914 = vadd.f32 %v303, %v913
        %v915 = vpop.f32.mrb[0].mxu0
        %v916 = vadd.f32 %v299, %v915
        %v917 = vpop.f32.mrb[0].mxu0
        %v918 = vadd.f32 %v303, %v917
        %919 = vmatprep.mubr.bf16.mxu0 0
        %920 = vmatmul.mubr.bf16.gmra.mrb[0].mxu0 %v385
        %v921 = vpop.f32.mrb[0].mxu0
        %v922 = vadd.f32 %v299, %v921
        %v923 = vpop.f32.mrb[0].mxu0
        %v924 = vadd.f32 %v303, %v923
        %v925 = vpop.f32.mrb[0].mxu0
        %v926 = vadd.f32 %v299, %v925
        %v927 = vpop.f32.mrb[0].mxu0
        %v928 = vadd.f32 %v303, %v927
        %929 = vmatprep.mubr.bf16.mxu0 0
        %930 = vmatmul.mubr.bf16.gmra.mrb[0].mxu0 %v386
        %v931 = vpop.f32.mrb[0].mxu0
        %v932 = vadd.f32 %v299, %v931
        %v933 = vpop.f32.mrb[0].mxu0
        %v934 = vadd.f32 %v303, %v933
        %v935 = vpop.f32.mrb[0].mxu0
        %v936 = vadd.f32 %v299, %v935
        %v937 = vpop.f32.mrb[0].mxu0
        %v938 = vadd.f32 %v303, %v937
        %939 = vmatprep.mubr.bf16.mxu0 0
        %940 = vmatmul.mubr.bf16.gmra.mrb[0].mxu0 %v387
        %v941 = vpop.f32.mrb[0].mxu0
        %v942 = vadd.f32 %v299, %v941
        %v943 = vpop.f32.mrb[0].mxu0
        %v944 = vadd.f32 %v303, %v943
        %v945 = vpop.f32.mrb[0].mxu0
        %v946 = vadd.f32 %v299, %v945
        %v947 = vpop.f32.mrb[0].mxu0
        %v948 = vadd.f32 %v303, %v947
        %949 = vdwg.mxu0
        %v950 = vmax.f32 %v599, 0.0
        %v951 = vmax.f32 %v601, 0.0
        %v952 = vmax.f32 %v792, 0.0
        %v953 = vmax.f32 %v794, 0.0
        %v954 = vmax.f32 %v603, 0.0
        %v955 = vmax.f32 %v605, 0.0
        %v956 = vmax.f32 %v796, 0.0
        %v957 = vmax.f32 %v798, 0.0
        %v958 = vmax.f32 %v609, 0.0
        %v959 = vmax.f32 %v611, 0.0
        %v960 = vmax.f32 %v802, 0.0
        %v961 = vmax.f32 %v804, 0.0
        %v962 = vmax.f32 %v613, 0.0
        %v963 = vmax.f32 %v615, 0.0
        %v964 = vmax.f32 %v806, 0.0
        %v965 = vmax.f32 %v808, 0.0
        %v966 = vmax.f32 %v619, 0.0
        %v967 = vmax.f32 %v621, 0.0
        %v968 = vmax.f32 %v812, 0.0
        %v969 = vmax.f32 %v814, 0.0
        %v970 = vmax.f32 %v623, 0.0
        %v971 = vmax.f32 %v625, 0.0
        %v972 = vmax.f32 %v816, 0.0
        %v973 = vmax.f32 %v818, 0.0
        %v974 = vmax.f32 %v629, 0.0
        %v975 = vmax.f32 %v631, 0.0
        %v976 = vmax.f32 %v822, 0.0
        %v977 = vmax.f32 %v824, 0.0
        %v978 = vmax.f32 %v633, 0.0
        %v979 = vmax.f32 %v635, 0.0
        %v980 = vmax.f32 %v826, 0.0
        %v981 = vmax.f32 %v828, 0.0
        %v982 = vmax.f32 %v639, 0.0
        %v983 = vmax.f32 %v641, 0.0
        %v984 = vmax.f32 %v832, 0.0
        %v985 = vmax.f32 %v834, 0.0
        %v986 = vmax.f32 %v643, 0.0
        %v987 = vmax.f32 %v645, 0.0
        %v988 = vmax.f32 %v836, 0.0
        %v989 = vmax.f32 %v838, 0.0
        %v990 = vmax.f32 %v649, 0.0
        %v991 = vmax.f32 %v651, 0.0
        %v992 = vmax.f32 %v842, 0.0
        %v993 = vmax.f32 %v844, 0.0
        %v994 = vmax.f32 %v653, 0.0
        %v995 = vmax.f32 %v655, 0.0
        %v996 = vmax.f32 %v846, 0.0
        %v997 = vmax.f32 %v848, 0.0
        %v998 = vmax.f32 %v659, 0.0
        %v999 = vmax.f32 %v661, 0.0
        %v1000 = vmax.f32 %v852, 0.0
        %v1001 = vmax.f32 %v854, 0.0
        %v1002 = vmax.f32 %v663, 0.0
        %v1003 = vmax.f32 %v665, 0.0
        %v1004 = vmax.f32 %v856, 0.0
        %v1005 = vmax.f32 %v858, 0.0
        %v1006 = vmax.f32 %v669, 0.0
        %v1007 = vmax.f32 %v671, 0.0
        %v1008 = vmax.f32 %v862, 0.0
        %v1009 = vmax.f32 %v864, 0.0
        %v1010 = vmax.f32 %v673, 0.0
        %v1011 = vmax.f32 %v675, 0.0
        %v1012 = vmax.f32 %v866, 0.0
        %v1013 = vmax.f32 %v868, 0.0
        %v1014 = vmax.f32 %v679, 0.0
        %v1015 = vmax.f32 %v681, 0.0
        %v1016 = vmax.f32 %v872, 0.0
        %v1017 = vmax.f32 %v874, 0.0
        %v1018 = vmax.f32 %v683, 0.0
        %v1019 = vmax.f32 %v685, 0.0
        %v1020 = vmax.f32 %v876, 0.0
        %v1021 = vmax.f32 %v878, 0.0
        %v1022 = vmax.f32 %v689, 0.0
        %v1023 = vmax.f32 %v691, 0.0
        %v1024 = vmax.f32 %v882, 0.0
        %v1025 = vmax.f32 %v884, 0.0
        %v1026 = vmax.f32 %v693, 0.0
        %v1027 = vmax.f32 %v695, 0.0
        %v1028 = vmax.f32 %v886, 0.0
        %v1029 = vmax.f32 %v888, 0.0
        %v1030 = vmax.f32 %v699, 0.0
        %v1031 = vmax.f32 %v701, 0.0
        %v1032 = vmax.f32 %v892, 0.0
        %v1033 = vmax.f32 %v894, 0.0
        %v1034 = vmax.f32 %v703, 0.0
        %v1035 = vmax.f32 %v705, 0.0
        %v1036 = vmax.f32 %v896, 0.0
        %v1037 = vmax.f32 %v898, 0.0
        %v1038 = vmax.f32 %v709, 0.0
        %v1039 = vmax.f32 %v711, 0.0
        %v1040 = vmax.f32 %v902, 0.0
        %v1041 = vmax.f32 %v904, 0.0
        %v1042 = vmax.f32 %v713, 0.0
        %v1043 = vmax.f32 %v715, 0.0
        %v1044 = vmax.f32 %v906, 0.0
        %v1045 = vmax.f32 %v908, 0.0
        %v1046 = vmax.f32 %v719, 0.0
        %v1047 = vmax.f32 %v721, 0.0
        %v1048 = vmax.f32 %v912, 0.0
        %v1049 = vmax.f32 %v914, 0.0
        %v1050 = vmax.f32 %v723, 0.0
        %v1051 = vmax.f32 %v725, 0.0
        %v1052 = vmax.f32 %v916, 0.0
        %v1053 = vmax.f32 %v918, 0.0
        %v1054 = vmax.f32 %v729, 0.0
        %v1055 = vmax.f32 %v731, 0.0
        %v1056 = vmax.f32 %v922, 0.0
        %v1057 = vmax.f32 %v924, 0.0
        %v1058 = vmax.f32 %v733, 0.0
        %v1059 = vmax.f32 %v735, 0.0
        %v1060 = vmax.f32 %v926, 0.0
        %v1061 = vmax.f32 %v928, 0.0
        %v1062 = vmax.f32 %v739, 0.0
        %v1063 = vmax.f32 %v741, 0.0
        %v1064 = vmax.f32 %v932, 0.0
        %v1065 = vmax.f32 %v934, 0.0
        %v1066 = vmax.f32 %v743, 0.0
        %v1067 = vmax.f32 %v745, 0.0
        %v1068 = vmax.f32 %v936, 0.0
        %v1069 = vmax.f32 %v938, 0.0
        %v1070 = vmax.f32 %v749, 0.0
        %v1071 = vmax.f32 %v751, 0.0
        %v1072 = vmax.f32 %v942, 0.0
        %v1073 = vmax.f32 %v944, 0.0
        %v1074 = vmax.f32 %v753, 0.0
        %v1075 = vmax.f32 %v755, 0.0
        %v1076 = vmax.f32 %v946, 0.0
        %v1077 = vmax.f32 %v948, 0.0
        %v1078 = vld [vmem:[%s218] sm:$0xff]
        %v1079 = vld [vmem:[%s218 + $0x8] sm:$0xff]
        %v1080 = vld [vmem:[%s218 + $0x10] sm:$0xff]
        %v1081 = vld [vmem:[%s218 + $0x18] sm:$0xff]
        %v1082 = vld [vmem:[%s218 + $0x20] sm:$0xff]
        %v1083 = vld [vmem:[%s218 + $0x28] sm:$0xff]
        %v1084 = vld [vmem:[%s218 + $0x30] sm:$0xff]
        %v1085 = vld [vmem:[%s218 + $0x38] sm:$0xff]
        %v1086 = vld [vmem:[%s218 + $0x40] sm:$0xff]
        %v1087 = vld [vmem:[%s218 + $0x48] sm:$0xff]
        %v1088 = vld [vmem:[%s218 + $0x50] sm:$0xff]
        %v1089 = vld [vmem:[%s218 + $0x58] sm:$0xff]
        %v1090 = vld [vmem:[%s218 + $0x60] sm:$0xff]
        %v1091 = vld [vmem:[%s218 + $0x68] sm:$0xff]
        %v1092 = vld [vmem:[%s218 + $0x70] sm:$0xff]
        %v1093 = vld [vmem:[%s218 + $0x78] sm:$0xff]
        %v1094 = vld [vmem:[%s218 + $0x80] sm:$0xff]
        %v1095 = vld [vmem:[%s218 + $0x88] sm:$0xff]
        %v1096 = vld [vmem:[%s218 + $0x90] sm:$0xff]
        %v1097 = vld [vmem:[%s218 + $0x98] sm:$0xff]
        %v1098 = vld [vmem:[%s218 + $0xa0] sm:$0xff]
        %v1099 = vld [vmem:[%s218 + $0xa8] sm:$0xff]
        %v1100 = vld [vmem:[%s218 + $0xb0] sm:$0xff]
        %v1101 = vld [vmem:[%s218 + $0xb8] sm:$0xff]
        %v1102 = vld [vmem:[%s218 + $0xc0] sm:$0xff]
        %v1103 = vld [vmem:[%s218 + $0xc8] sm:$0xff]
        %v1104 = vld [vmem:[%s218 + $0xd0] sm:$0xff]
        %v1105 = vld [vmem:[%s218 + $0xd8] sm:$0xff]
        %v1106 = vld [vmem:[%s218 + $0xe0] sm:$0xff]
        %v1107 = vld [vmem:[%s218 + $0xe8] sm:$0xff]
        %v1108 = vld [vmem:[%s218 + $0xf0] sm:$0xff]
        %v1109 = vld [vmem:[%s218 + $0xf8] sm:$0xff]
        %1110 = vmax.xlane.f32.xlu0 %v950
        %v1111 = vpop.xlane.xlu0 %1110
        %1112 = vmax.xlane.f32.xlu0 %v954
        %v1113 = vpop.xlane.xlu0 %1112
        %1114 = vmax.xlane.f32.xlu0 %v958
        %v1115 = vpop.xlane.xlu0 %1114
        %1116 = vmax.xlane.f32.xlu0 %v962
        %v1117 = vpop.xlane.xlu0 %1116
        %1118 = vmax.xlane.f32.xlu0 %v966
        %v1119 = vpop.xlane.xlu0 %1118
        %1120 = vmax.xlane.f32.xlu0 %v970
        %v1121 = vpop.xlane.xlu0 %1120
        %1122 = vmax.xlane.f32.xlu0 %v974
        %v1123 = vpop.xlane.xlu0 %1122
        %1124 = vmax.xlane.f32.xlu0 %v978
        %v1125 = vpop.xlane.xlu0 %1124
        %1126 = vmax.xlane.f32.xlu0 %v982
        %v1127 = vpop.xlane.xlu0 %1126
        %1128 = vmax.xlane.f32.xlu0 %v986
        %v1129 = vpop.xlane.xlu0 %1128
        %1130 = vmax.xlane.f32.xlu0 %v990
        %v1131 = vpop.xlane.xlu0 %1130
        %1132 = vmax.xlane.f32.xlu0 %v994
        %v1133 = vpop.xlane.xlu0 %1132
        %1134 = vmax.xlane.f32.xlu0 %v998
        %v1135 = vpop.xlane.xlu0 %1134
        %1136 = vmax.xlane.f32.xlu0 %v1002
        %v1137 = vpop.xlane.xlu0 %1136
        %1138 = vmax.xlane.f32.xlu0 %v1006
        %v1139 = vpop.xlane.xlu0 %1138
        %1140 = vmax.xlane.f32.xlu0 %v1010
        %v1141 = vpop.xlane.xlu0 %1140
        %1142 = vmax.xlane.f32.xlu0 %v1014
        %v1143 = vpop.xlane.xlu0 %1142
        %1144 = vmax.xlane.f32.xlu0 %v1018
        %v1145 = vpop.xlane.xlu0 %1144
        %1146 = vmax.xlane.f32.xlu0 %v1022
        %v1147 = vpop.xlane.xlu0 %1146
        %1148 = vmax.xlane.f32.xlu0 %v1026
        %v1149 = vpop.xlane.xlu0 %1148
        %1150 = vmax.xlane.f32.xlu0 %v1030
        %v1151 = vpop.xlane.xlu0 %1150
        %1152 = vmax.xlane.f32.xlu0 %v1034
        %v1153 = vpop.xlane.xlu0 %1152
        %1154 = vmax.xlane.f32.xlu0 %v1038
        %v1155 = vpop.xlane.xlu0 %1154
        %1156 = vmax.xlane.f32.xlu0 %v1042
        %v1157 = vpop.xlane.xlu0 %1156
        %1158 = vmax.xlane.f32.xlu0 %v1046
        %v1159 = vpop.xlane.xlu0 %1158
        %1160 = vmax.xlane.f32.xlu0 %v1050
        %v1161 = vpop.xlane.xlu0 %1160
        %1162 = vmax.xlane.f32.xlu0 %v1054
        %v1163 = vpop.xlane.xlu0 %1162
        %1164 = vmax.xlane.f32.xlu0 %v1058
        %v1165 = vpop.xlane.xlu0 %1164
        %1166 = vmax.xlane.f32.xlu0 %v1062
        %v1167 = vpop.xlane.xlu0 %1166
        %1168 = vmax.xlane.f32.xlu0 %v1066
        %v1169 = vpop.xlane.xlu0 %1168
        %1170 = vmax.xlane.f32.xlu0 %v1070
        %v1171 = vpop.xlane.xlu0 %1170
        %1172 = vmax.xlane.f32.xlu0 %v1074
        %v1173 = vpop.xlane.xlu0 %1172
        %v1174 = vsub.f32 %v950, %v1111
        %v1175 = vsub.f32 %v954, %v1113
        %v1176 = vsub.f32 %v958, %v1115
        %v1177 = vsub.f32 %v962, %v1117
        %v1178 = vsub.f32 %v966, %v1119
        %v1179 = vsub.f32 %v970, %v1121
        %v1180 = vsub.f32 %v974, %v1123
        %v1181 = vsub.f32 %v978, %v1125
        %v1182 = vsub.f32 %v982, %v1127
        %v1183 = vsub.f32 %v986, %v1129
        %v1184 = vsub.f32 %v990, %v1131
        %v1185 = vsub.f32 %v994, %v1133
        %v1186 = vsub.f32 %v998, %v1135
        %v1187 = vsub.f32 %v1002, %v1137
        %v1188 = vsub.f32 %v1006, %v1139
        %v1189 = vsub.f32 %v1010, %v1141
        %v1190 = vsub.f32 %v1014, %v1143
        %v1191 = vsub.f32 %v1018, %v1145
        %v1192 = vsub.f32 %v1022, %v1147
        %v1193 = vsub.f32 %v1026, %v1149
        %v1194 = vsub.f32 %v1030, %v1151
        %v1195 = vsub.f32 %v1034, %v1153
        %v1196 = vsub.f32 %v1038, %v1155
        %v1197 = vsub.f32 %v1042, %v1157
        %v1198 = vsub.f32 %v1046, %v1159
        %v1199 = vsub.f32 %v1050, %v1161
        %v1200 = vsub.f32 %v1054, %v1163
        %v1201 = vsub.f32 %v1058, %v1165
        %v1202 = vsub.f32 %v1062, %v1167
        %v1203 = vsub.f32 %v1066, %v1169
        %v1204 = vsub.f32 %v1070, %v1171
        %v1205 = vsub.f32 %v1074, %v1173
        %v1206 = vmul.f32 %v1174, 1.442695
        %v1207 = vpow.pop %v1206
        %v1208 = vmul.f32 %v1175, 1.442695
        %v1209 = vpow.pop %v1208
        %v1210 = vmul.f32 %v1176, 1.442695
        %v1211 = vpow.pop %v1210
        %v1212 = vmul.f32 %v1177, 1.442695
        %v1213 = vpow.pop %v1212
        %v1214 = vmul.f32 %v1178, 1.442695
        %v1215 = vpow.pop %v1214
        %v1216 = vmul.f32 %v1179, 1.442695
        %v1217 = vpow.pop %v1216
        %v1218 = vmul.f32 %v1180, 1.442695
        %v1219 = vpow.pop %v1218
        %v1220 = vmul.f32 %v1181, 1.442695
        %v1221 = vpow.pop %v1220
        %v1222 = vmul.f32 %v1182, 1.442695
        %v1223 = vpow.pop %v1222
        %v1224 = vmul.f32 %v1183, 1.442695
        %v1225 = vpow.pop %v1224
        %v1226 = vmul.f32 %v1184, 1.442695
        %v1227 = vpow.pop %v1226
        %v1228 = vmul.f32 %v1185, 1.442695
        %v1229 = vpow.pop %v1228
        %v1230 = vmul.f32 %v1186, 1.442695
        %v1231 = vpow.pop %v1230
        %v1232 = vmul.f32 %v1187, 1.442695
        %v1233 = vpow.pop %v1232
        %v1234 = vmul.f32 %v1188, 1.442695
        %v1235 = vpow.pop %v1234
        %v1236 = vmul.f32 %v1189, 1.442695
        %v1237 = vpow.pop %v1236
        %v1238 = vmul.f32 %v1190, 1.442695
        %v1239 = vpow.pop %v1238
        %v1240 = vmul.f32 %v1191, 1.442695
        %v1241 = vpow.pop %v1240
        %v1242 = vmul.f32 %v1192, 1.442695
        %v1243 = vpow.pop %v1242
        %v1244 = vmul.f32 %v1193, 1.442695
        %v1245 = vpow.pop %v1244
        %v1246 = vmul.f32 %v1194, 1.442695
        %v1247 = vpow.pop %v1246
        %v1248 = vmul.f32 %v1195, 1.442695
        %v1249 = vpow.pop %v1248
        %v1250 = vmul.f32 %v1196, 1.442695
        %v1251 = vpow.pop %v1250
        %v1252 = vmul.f32 %v1197, 1.442695
        %v1253 = vpow.pop %v1252
        %v1254 = vmul.f32 %v1198, 1.442695
        %v1255 = vpow.pop %v1254
        %v1256 = vmul.f32 %v1199, 1.442695
        %v1257 = vpow.pop %v1256
        %v1258 = vmul.f32 %v1200, 1.442695
        %v1259 = vpow.pop %v1258
        %v1260 = vmul.f32 %v1201, 1.442695
        %v1261 = vpow.pop %v1260
        %v1262 = vmul.f32 %v1202, 1.442695
        %v1263 = vpow.pop %v1262
        %v1264 = vmul.f32 %v1203, 1.442695
        %v1265 = vpow.pop %v1264
        %v1266 = vmul.f32 %v1204, 1.442695
        %v1267 = vpow.pop %v1266
        %v1268 = vmul.f32 %v1205, 1.442695
        %v1269 = vpow.pop %v1268
        %1270 = vadd.xlane.f32.xlu0 %v1207
        %v1271 = vpop.xlane.xlu0 %1270
        %1272 = vadd.xlane.f32.xlu0 %v1209
        %v1273 = vpop.xlane.xlu0 %1272
        %1274 = vadd.xlane.f32.xlu0 %v1211
        %v1275 = vpop.xlane.xlu0 %1274
        %1276 = vadd.xlane.f32.xlu0 %v1213
        %v1277 = vpop.xlane.xlu0 %1276
        %1278 = vadd.xlane.f32.xlu0 %v1215
        %v1279 = vpop.xlane.xlu0 %1278
        %1280 = vadd.xlane.f32.xlu0 %v1217
        %v1281 = vpop.xlane.xlu0 %1280
        %1282 = vadd.xlane.f32.xlu0 %v1219
        %v1283 = vpop.xlane.xlu0 %1282
        %1284 = vadd.xlane.f32.xlu0 %v1221
        %v1285 = vpop.xlane.xlu0 %1284
        %1286 = vadd.xlane.f32.xlu0 %v1223
        %v1287 = vpop.xlane.xlu0 %1286
        %1288 = vadd.xlane.f32.xlu0 %v1225
        %v1289 = vpop.xlane.xlu0 %1288
        %1290 = vadd.xlane.f32.xlu0 %v1227
        %v1291 = vpop.xlane.xlu0 %1290
        %1292 = vadd.xlane.f32.xlu0 %v1229
        %v1293 = vpop.xlane.xlu0 %1292
        %1294 = vadd.xlane.f32.xlu0 %v1231
        %v1295 = vpop.xlane.xlu0 %1294
        %1296 = vadd.xlane.f32.xlu0 %v1233
        %v1297 = vpop.xlane.xlu0 %1296
        %1298 = vadd.xlane.f32.xlu0 %v1235
        %v1299 = vpop.xlane.xlu0 %1298
        %1300 = vadd.xlane.f32.xlu0 %v1237
        %v1301 = vpop.xlane.xlu0 %1300
        %1302 = vadd.xlane.f32.xlu0 %v1239
        %v1303 = vpop.xlane.xlu0 %1302
        %1304 = vadd.xlane.f32.xlu0 %v1241
        %v1305 = vpop.xlane.xlu0 %1304
        %1306 = vadd.xlane.f32.xlu0 %v1243
        %v1307 = vpop.xlane.xlu0 %1306
        %1308 = vadd.xlane.f32.xlu0 %v1245
        %v1309 = vpop.xlane.xlu0 %1308
        %1310 = vadd.xlane.f32.xlu0 %v1247
        %v1311 = vpop.xlane.xlu0 %1310
        %1312 = vadd.xlane.f32.xlu0 %v1249
        %v1313 = vpop.xlane.xlu0 %1312
        %1314 = vadd.xlane.f32.xlu0 %v1251
        %v1315 = vpop.xlane.xlu0 %1314
        %1316 = vadd.xlane.f32.xlu0 %v1253
        %v1317 = vpop.xlane.xlu0 %1316
        %1318 = vadd.xlane.f32.xlu0 %v1255
        %v1319 = vpop.xlane.xlu0 %1318
        %1320 = vadd.xlane.f32.xlu0 %v1257
        %v1321 = vpop.xlane.xlu0 %1320
        %1322 = vadd.xlane.f32.xlu0 %v1259
        %v1323 = vpop.xlane.xlu0 %1322
        %1324 = vadd.xlane.f32.xlu0 %v1261
        %v1325 = vpop.xlane.xlu0 %1324
        %1326 = vadd.xlane.f32.xlu0 %v1263
        %v1327 = vpop.xlane.xlu0 %1326
        %1328 = vadd.xlane.f32.xlu0 %v1265
        %v1329 = vpop.xlane.xlu0 %1328
        %1330 = vadd.xlane.f32.xlu0 %v1267
        %v1331 = vpop.xlane.xlu0 %1330
        %1332 = vadd.xlane.f32.xlu0 %v1269
        %v1333 = vpop.xlane.xlu0 %1332
        %v1334 = vrcp.pop %v1271
        %v1335 = vrcp.pop %v1273
        %v1336 = vrcp.pop %v1275
        %v1337 = vrcp.pop %v1277
        %v1338 = vrcp.pop %v1279
        %v1339 = vrcp.pop %v1281
        %v1340 = vrcp.pop %v1283
        %v1341 = vrcp.pop %v1285
        %v1342 = vrcp.pop %v1287
        %v1343 = vrcp.pop %v1289
        %v1344 = vrcp.pop %v1291
        %v1345 = vrcp.pop %v1293
        %v1346 = vrcp.pop %v1295
        %v1347 = vrcp.pop %v1297
        %v1348 = vrcp.pop %v1299
        %v1349 = vrcp.pop %v1301
        %v1350 = vrcp.pop %v1303
        %v1351 = vrcp.pop %v1305
        %v1352 = vrcp.pop %v1307
        %v1353 = vrcp.pop %v1309
        %v1354 = vrcp.pop %v1311
        %v1355 = vrcp.pop %v1313
        %v1356 = vrcp.pop %v1315
        %v1357 = vrcp.pop %v1317
        %v1358 = vrcp.pop %v1319
        %v1359 = vrcp.pop %v1321
        %v1360 = vrcp.pop %v1323
        %v1361 = vrcp.pop %v1325
        %v1362 = vrcp.pop %v1327
        %v1363 = vrcp.pop %v1329
        %v1364 = vrcp.pop %v1331
        %v1365 = vrcp.pop %v1333
        %v1366 = vmul.f32 %v1207, %v1334
        %v1367 = vmul.f32 %v1209, %v1335
        %v1368 = vmul.f32 %v1211, %v1336
        %v1369 = vmul.f32 %v1213, %v1337
        %v1370 = vmul.f32 %v1215, %v1338
        %v1371 = vmul.f32 %v1217, %v1339
        %v1372 = vmul.f32 %v1219, %v1340
        %v1373 = vmul.f32 %v1221, %v1341
        %v1374 = vmul.f32 %v1223, %v1342
        %v1375 = vmul.f32 %v1225, %v1343
        %v1376 = vmul.f32 %v1227, %v1344
        %v1377 = vmul.f32 %v1229, %v1345
        %v1378 = vmul.f32 %v1231, %v1346
        %v1379 = vmul.f32 %v1233, %v1347
        %v1380 = vmul.f32 %v1235, %v1348
        %v1381 = vmul.f32 %v1237, %v1349
        %v1382 = vmul.f32 %v1239, %v1350
        %v1383 = vmul.f32 %v1241, %v1351
        %v1384 = vmul.f32 %v1243, %v1352
        %v1385 = vmul.f32 %v1245, %v1353
        %v1386 = vmul.f32 %v1247, %v1354
        %v1387 = vmul.f32 %v1249, %v1355
        %v1388 = vmul.f32 %v1251, %v1356
        %v1389 = vmul.f32 %v1253, %v1357
        %v1390 = vmul.f32 %v1255, %v1358
        %v1391 = vmul.f32 %v1257, %v1359
        %v1392 = vmul.f32 %v1259, %v1360
        %v1393 = vmul.f32 %v1261, %v1361
        %v1394 = vmul.f32 %v1263, %v1362
        %v1395 = vmul.f32 %v1265, %v1363
        %v1396 = vmul.f32 %v1267, %v1364
        %v1397 = vmul.f32 %v1269, %v1365
        %1399 = vset.pattern.permute.xlu0 0
        %1400 = vperm.xlu0 %1399, %v1078
        %v1401 = vpop.permute.xlu0 %1400
        %1404 = vset.pattern.permute.xlu0 0
        %1405 = vperm.xlu0 %1404, %v1079
        %v1406 = vpop.permute.xlu0 %1405
        %1409 = vset.pattern.permute.xlu0 0
        %1410 = vperm.xlu0 %1409, %v1080
        %v1411 = vpop.permute.xlu0 %1410
        %1414 = vset.pattern.permute.xlu0 0
        %1415 = vperm.xlu0 %1414, %v1081
        %v1416 = vpop.permute.xlu0 %1415
        %1419 = vset.pattern.permute.xlu0 0
        %1420 = vperm.xlu0 %1419, %v1082
        %v1421 = vpop.permute.xlu0 %1420
        %1424 = vset.pattern.permute.xlu0 0
        %1425 = vperm.xlu0 %1424, %v1083
        %v1426 = vpop.permute.xlu0 %1425
        %1429 = vset.pattern.permute.xlu0 0
        %1430 = vperm.xlu0 %1429, %v1084
        %v1431 = vpop.permute.xlu0 %1430
        %1434 = vset.pattern.permute.xlu0 0
        %1435 = vperm.xlu0 %1434, %v1085
        %v1436 = vpop.permute.xlu0 %1435
        %1439 = vset.pattern.permute.xlu0 0
        %1440 = vperm.xlu0 %1439, %v1086
        %v1441 = vpop.permute.xlu0 %1440
        %1444 = vset.pattern.permute.xlu0 0
        %1445 = vperm.xlu0 %1444, %v1087
        %v1446 = vpop.permute.xlu0 %1445
        %1449 = vset.pattern.permute.xlu0 0
        %1450 = vperm.xlu0 %1449, %v1088
        %v1451 = vpop.permute.xlu0 %1450
        %1454 = vset.pattern.permute.xlu0 0
        %1455 = vperm.xlu0 %1454, %v1089
        %v1456 = vpop.permute.xlu0 %1455
        %1459 = vset.pattern.permute.xlu0 0
        %1460 = vperm.xlu0 %1459, %v1090
        %v1461 = vpop.permute.xlu0 %1460
        %1464 = vset.pattern.permute.xlu0 0
        %1465 = vperm.xlu0 %1464, %v1091
        %v1466 = vpop.permute.xlu0 %1465
        %1469 = vset.pattern.permute.xlu0 0
        %1470 = vperm.xlu0 %1469, %v1092
        %v1471 = vpop.permute.xlu0 %1470
        %1474 = vset.pattern.permute.xlu0 0
        %1475 = vperm.xlu0 %1474, %v1093
        %v1476 = vpop.permute.xlu0 %1475
        %1479 = vset.pattern.permute.xlu0 0
        %1480 = vperm.xlu0 %1479, %v1094
        %v1481 = vpop.permute.xlu0 %1480
        %1484 = vset.pattern.permute.xlu0 0
        %1485 = vperm.xlu0 %1484, %v1095
        %v1486 = vpop.permute.xlu0 %1485
        %1489 = vset.pattern.permute.xlu0 0
        %1490 = vperm.xlu0 %1489, %v1096
        %v1491 = vpop.permute.xlu0 %1490
        %1494 = vset.pattern.permute.xlu0 0
        %1495 = vperm.xlu0 %1494, %v1097
        %v1496 = vpop.permute.xlu0 %1495
        %1499 = vset.pattern.permute.xlu0 0
        %1500 = vperm.xlu0 %1499, %v1098
        %v1501 = vpop.permute.xlu0 %1500
        %1504 = vset.pattern.permute.xlu0 0
        %1505 = vperm.xlu0 %1504, %v1099
        %v1506 = vpop.permute.xlu0 %1505
        %1509 = vset.pattern.permute.xlu0 0
        %1510 = vperm.xlu0 %1509, %v1100
        %v1511 = vpop.permute.xlu0 %1510
        %1514 = vset.pattern.permute.xlu0 0
        %1515 = vperm.xlu0 %1514, %v1101
        %v1516 = vpop.permute.xlu0 %1515
        %1519 = vset.pattern.permute.xlu0 0
        %1520 = vperm.xlu0 %1519, %v1102
        %v1521 = vpop.permute.xlu0 %1520
        %1524 = vset.pattern.permute.xlu0 0
        %1525 = vperm.xlu0 %1524, %v1103
        %v1526 = vpop.permute.xlu0 %1525
        %1529 = vset.pattern.permute.xlu0 0
        %1530 = vperm.xlu0 %1529, %v1104
        %v1531 = vpop.permute.xlu0 %1530
        %1534 = vset.pattern.permute.xlu0 0
        %1535 = vperm.xlu0 %1534, %v1105
        %v1536 = vpop.permute.xlu0 %1535
        %1539 = vset.pattern.permute.xlu0 0
        %1540 = vperm.xlu0 %1539, %v1106
        %v1541 = vpop.permute.xlu0 %1540
        %1544 = vset.pattern.permute.xlu0 0
        %1545 = vperm.xlu0 %1544, %v1107
        %v1546 = vpop.permute.xlu0 %1545
        %1549 = vset.pattern.permute.xlu0 0
        %1550 = vperm.xlu0 %1549, %v1108
        %v1551 = vpop.permute.xlu0 %1550
        %1554 = vset.pattern.permute.xlu0 0
        %1555 = vperm.xlu0 %1554, %v1109
        %v1556 = vpop.permute.xlu0 %1555
        %v1558 = vmul.f32 %v1401, %v1366
        %v1559 = vmul.f32 %v1406, %v1367
        %v1560 = vmul.f32 %v1411, %v1368
        %v1561 = vmul.f32 %v1416, %v1369
        %v1562 = vmul.f32 %v1421, %v1370
        %v1563 = vmul.f32 %v1426, %v1371
        %v1564 = vmul.f32 %v1431, %v1372
        %v1565 = vmul.f32 %v1436, %v1373
        %v1566 = vmul.f32 %v1441, %v1374
        %v1567 = vmul.f32 %v1446, %v1375
        %v1568 = vmul.f32 %v1451, %v1376
        %v1569 = vmul.f32 %v1456, %v1377
        %v1570 = vmul.f32 %v1461, %v1378
        %v1571 = vmul.f32 %v1466, %v1379
        %v1572 = vmul.f32 %v1471, %v1380
        %v1573 = vmul.f32 %v1476, %v1381
        %v1574 = vmul.f32 %v1481, %v1382
        %v1575 = vmul.f32 %v1486, %v1383
        %v1576 = vmul.f32 %v1491, %v1384
        %v1577 = vmul.f32 %v1496, %v1385
        %v1578 = vmul.f32 %v1501, %v1386
        %v1579 = vmul.f32 %v1506, %v1387
        %v1580 = vmul.f32 %v1511, %v1388
        %v1581 = vmul.f32 %v1516, %v1389
        %v1582 = vmul.f32 %v1521, %v1390
        %v1583 = vmul.f32 %v1526, %v1391
        %v1584 = vmul.f32 %v1531, %v1392
        %v1585 = vmul.f32 %v1536, %v1393
        %v1586 = vmul.f32 %v1541, %v1394
        %v1587 = vmul.f32 %v1546, %v1395
        %v1588 = vmul.f32 %v1551, %v1396
        %v1589 = vmul.f32 %v1556, %v1397
        %v1590 = vadd.f32 %v1558, 0.0
        %v1591 = vadd.f32 %v1559, 0.0
        %v1592 = vadd.f32 %v1560, 0.0
        %v1593 = vadd.f32 %v1561, 0.0
        %v1594 = vadd.f32 %v1562, 0.0
        %v1595 = vadd.f32 %v1563, 0.0
        %v1596 = vadd.f32 %v1564, 0.0
        %v1597 = vadd.f32 %v1565, 0.0
        %v1598 = vadd.f32 %v1566, 0.0
        %v1599 = vadd.f32 %v1567, 0.0
        %v1600 = vadd.f32 %v1568, 0.0
        %v1601 = vadd.f32 %v1569, 0.0
        %v1602 = vadd.f32 %v1570, 0.0
        %v1603 = vadd.f32 %v1571, 0.0
        %v1604 = vadd.f32 %v1572, 0.0
        %v1605 = vadd.f32 %v1573, 0.0
        %v1606 = vadd.f32 %v1574, 0.0
        %v1607 = vadd.f32 %v1575, 0.0
        %v1608 = vadd.f32 %v1576, 0.0
        %v1609 = vadd.f32 %v1577, 0.0
        %v1610 = vadd.f32 %v1578, 0.0
        %v1611 = vadd.f32 %v1579, 0.0
        %v1612 = vadd.f32 %v1580, 0.0
        %v1613 = vadd.f32 %v1581, 0.0
        %v1614 = vadd.f32 %v1582, 0.0
        %v1615 = vadd.f32 %v1583, 0.0
        %v1616 = vadd.f32 %v1584, 0.0
        %v1617 = vadd.f32 %v1585, 0.0
        %v1618 = vadd.f32 %v1586, 0.0
        %v1619 = vadd.f32 %v1587, 0.0
        %v1620 = vadd.f32 %v1588, 0.0
        %v1621 = vadd.f32 %v1589, 0.0
        %1622 = vmax.xlane.f32.xlu0 %v951
        %v1623 = vpop.xlane.xlu0 %1622
        %1624 = vmax.xlane.f32.xlu0 %v955
        %v1625 = vpop.xlane.xlu0 %1624
        %1626 = vmax.xlane.f32.xlu0 %v959
        %v1627 = vpop.xlane.xlu0 %1626
        %1628 = vmax.xlane.f32.xlu0 %v963
        %v1629 = vpop.xlane.xlu0 %1628
        %1630 = vmax.xlane.f32.xlu0 %v967
        %v1631 = vpop.xlane.xlu0 %1630
        %1632 = vmax.xlane.f32.xlu0 %v971
        %v1633 = vpop.xlane.xlu0 %1632
        %1634 = vmax.xlane.f32.xlu0 %v975
        %v1635 = vpop.xlane.xlu0 %1634
        %1636 = vmax.xlane.f32.xlu0 %v979
        %v1637 = vpop.xlane.xlu0 %1636
        %1638 = vmax.xlane.f32.xlu0 %v983
        %v1639 = vpop.xlane.xlu0 %1638
        %1640 = vmax.xlane.f32.xlu0 %v987
        %v1641 = vpop.xlane.xlu0 %1640
        %1642 = vmax.xlane.f32.xlu0 %v991
        %v1643 = vpop.xlane.xlu0 %1642
        %1644 = vmax.xlane.f32.xlu0 %v995
        %v1645 = vpop.xlane.xlu0 %1644
        %1646 = vmax.xlane.f32.xlu0 %v999
        %v1647 = vpop.xlane.xlu0 %1646
        %1648 = vmax.xlane.f32.xlu0 %v1003
        %v1649 = vpop.xlane.xlu0 %1648
        %1650 = vmax.xlane.f32.xlu0 %v1007
        %v1651 = vpop.xlane.xlu0 %1650
        %1652 = vmax.xlane.f32.xlu0 %v1011
        %v1653 = vpop.xlane.xlu0 %1652
        %1654 = vmax.xlane.f32.xlu0 %v1015
        %v1655 = vpop.xlane.xlu0 %1654
        %1656 = vmax.xlane.f32.xlu0 %v1019
        %v1657 = vpop.xlane.xlu0 %1656
        %1658 = vmax.xlane.f32.xlu0 %v1023
        %v1659 = vpop.xlane.xlu0 %1658
        %1660 = vmax.xlane.f32.xlu0 %v1027
        %v1661 = vpop.xlane.xlu0 %1660
        %1662 = vmax.xlane.f32.xlu0 %v1031
        %v1663 = vpop.xlane.xlu0 %1662
        %1664 = vmax.xlane.f32.xlu0 %v1035
        %v1665 = vpop.xlane.xlu0 %1664
        %1666 = vmax.xlane.f32.xlu0 %v1039
        %v1667 = vpop.xlane.xlu0 %1666
        %1668 = vmax.xlane.f32.xlu0 %v1043
        %v1669 = vpop.xlane.xlu0 %1668
        %1670 = vmax.xlane.f32.xlu0 %v1047
        %v1671 = vpop.xlane.xlu0 %1670
        %1672 = vmax.xlane.f32.xlu0 %v1051
        %v1673 = vpop.xlane.xlu0 %1672
        %1674 = vmax.xlane.f32.xlu0 %v1055
        %v1675 = vpop.xlane.xlu0 %1674
        %1676 = vmax.xlane.f32.xlu0 %v1059
        %v1677 = vpop.xlane.xlu0 %1676
        %1678 = vmax.xlane.f32.xlu0 %v1063
        %v1679 = vpop.xlane.xlu0 %1678
        %1680 = vmax.xlane.f32.xlu0 %v1067
        %v1681 = vpop.xlane.xlu0 %1680
        %1682 = vmax.xlane.f32.xlu0 %v1071
        %v1683 = vpop.xlane.xlu0 %1682
        %1684 = vmax.xlane.f32.xlu0 %v1075
        %v1685 = vpop.xlane.xlu0 %1684
        %v1686 = vsub.f32 %v951, %v1623
        %v1687 = vsub.f32 %v955, %v1625
        %v1688 = vsub.f32 %v959, %v1627
        %v1689 = vsub.f32 %v963, %v1629
        %v1690 = vsub.f32 %v967, %v1631
        %v1691 = vsub.f32 %v971, %v1633
        %v1692 = vsub.f32 %v975, %v1635
        %v1693 = vsub.f32 %v979, %v1637
        %v1694 = vsub.f32 %v983, %v1639
        %v1695 = vsub.f32 %v987, %v1641
        %v1696 = vsub.f32 %v991, %v1643
        %v1697 = vsub.f32 %v995, %v1645
        %v1698 = vsub.f32 %v999, %v1647
        %v1699 = vsub.f32 %v1003, %v1649
        %v1700 = vsub.f32 %v1007, %v1651
        %v1701 = vsub.f32 %v1011, %v1653
        %v1702 = vsub.f32 %v1015, %v1655
        %v1703 = vsub.f32 %v1019, %v1657
        %v1704 = vsub.f32 %v1023, %v1659
        %v1705 = vsub.f32 %v1027, %v1661
        %v1706 = vsub.f32 %v1031, %v1663
        %v1707 = vsub.f32 %v1035, %v1665
        %v1708 = vsub.f32 %v1039, %v1667
        %v1709 = vsub.f32 %v1043, %v1669
        %v1710 = vsub.f32 %v1047, %v1671
        %v1711 = vsub.f32 %v1051, %v1673
        %v1712 = vsub.f32 %v1055, %v1675
        %v1713 = vsub.f32 %v1059, %v1677
        %v1714 = vsub.f32 %v1063, %v1679
        %v1715 = vsub.f32 %v1067, %v1681
        %v1716 = vsub.f32 %v1071, %v1683
        %v1717 = vsub.f32 %v1075, %v1685
        %v1718 = vmul.f32 %v1686, 1.442695
        %v1719 = vpow.pop %v1718
        %v1720 = vmul.f32 %v1687, 1.442695
        %v1721 = vpow.pop %v1720
        %v1722 = vmul.f32 %v1688, 1.442695
        %v1723 = vpow.pop %v1722
        %v1724 = vmul.f32 %v1689, 1.442695
        %v1725 = vpow.pop %v1724
        %v1726 = vmul.f32 %v1690, 1.442695
        %v1727 = vpow.pop %v1726
        %v1728 = vmul.f32 %v1691, 1.442695
        %v1729 = vpow.pop %v1728
        %v1730 = vmul.f32 %v1692, 1.442695
        %v1731 = vpow.pop %v1730
        %v1732 = vmul.f32 %v1693, 1.442695
        %v1733 = vpow.pop %v1732
        %v1734 = vmul.f32 %v1694, 1.442695
        %v1735 = vpow.pop %v1734
        %v1736 = vmul.f32 %v1695, 1.442695
        %v1737 = vpow.pop %v1736
        %v1738 = vmul.f32 %v1696, 1.442695
        %v1739 = vpow.pop %v1738
        %v1740 = vmul.f32 %v1697, 1.442695
        %v1741 = vpow.pop %v1740
        %v1742 = vmul.f32 %v1698, 1.442695
        %v1743 = vpow.pop %v1742
        %v1744 = vmul.f32 %v1699, 1.442695
        %v1745 = vpow.pop %v1744
        %v1746 = vmul.f32 %v1700, 1.442695
        %v1747 = vpow.pop %v1746
        %v1748 = vmul.f32 %v1701, 1.442695
        %v1749 = vpow.pop %v1748
        %v1750 = vmul.f32 %v1702, 1.442695
        %v1751 = vpow.pop %v1750
        %v1752 = vmul.f32 %v1703, 1.442695
        %v1753 = vpow.pop %v1752
        %v1754 = vmul.f32 %v1704, 1.442695
        %v1755 = vpow.pop %v1754
        %v1756 = vmul.f32 %v1705, 1.442695
        %v1757 = vpow.pop %v1756
        %v1758 = vmul.f32 %v1706, 1.442695
        %v1759 = vpow.pop %v1758
        %v1760 = vmul.f32 %v1707, 1.442695
        %v1761 = vpow.pop %v1760
        %v1762 = vmul.f32 %v1708, 1.442695
        %v1763 = vpow.pop %v1762
        %v1764 = vmul.f32 %v1709, 1.442695
        %v1765 = vpow.pop %v1764
        %v1766 = vmul.f32 %v1710, 1.442695
        %v1767 = vpow.pop %v1766
        %v1768 = vmul.f32 %v1711, 1.442695
        %v1769 = vpow.pop %v1768
        %v1770 = vmul.f32 %v1712, 1.442695
        %v1771 = vpow.pop %v1770
        %v1772 = vmul.f32 %v1713, 1.442695
        %v1773 = vpow.pop %v1772
        %v1774 = vmul.f32 %v1714, 1.442695
        %v1775 = vpow.pop %v1774
        %v1776 = vmul.f32 %v1715, 1.442695
        %v1777 = vpow.pop %v1776
        %v1778 = vmul.f32 %v1716, 1.442695
        %v1779 = vpow.pop %v1778
        %v1780 = vmul.f32 %v1717, 1.442695
        %v1781 = vpow.pop %v1780
        %1782 = vadd.xlane.f32.xlu0 %v1719
        %v1783 = vpop.xlane.xlu0 %1782
        %1784 = vadd.xlane.f32.xlu0 %v1721
        %v1785 = vpop.xlane.xlu0 %1784
        %1786 = vadd.xlane.f32.xlu0 %v1723
        %v1787 = vpop.xlane.xlu0 %1786
        %1788 = vadd.xlane.f32.xlu0 %v1725
        %v1789 = vpop.xlane.xlu0 %1788
        %1790 = vadd.xlane.f32.xlu0 %v1727
        %v1791 = vpop.xlane.xlu0 %1790
        %1792 = vadd.xlane.f32.xlu0 %v1729
        %v1793 = vpop.xlane.xlu0 %1792
        %1794 = vadd.xlane.f32.xlu0 %v1731
        %v1795 = vpop.xlane.xlu0 %1794
        %1796 = vadd.xlane.f32.xlu0 %v1733
        %v1797 = vpop.xlane.xlu0 %1796
        %1798 = vadd.xlane.f32.xlu0 %v1735
        %v1799 = vpop.xlane.xlu0 %1798
        %1800 = vadd.xlane.f32.xlu0 %v1737
        %v1801 = vpop.xlane.xlu0 %1800
        %1802 = vadd.xlane.f32.xlu0 %v1739
        %v1803 = vpop.xlane.xlu0 %1802
        %1804 = vadd.xlane.f32.xlu0 %v1741
        %v1805 = vpop.xlane.xlu0 %1804
        %1806 = vadd.xlane.f32.xlu0 %v1743
        %v1807 = vpop.xlane.xlu0 %1806
        %1808 = vadd.xlane.f32.xlu0 %v1745
        %v1809 = vpop.xlane.xlu0 %1808
        %1810 = vadd.xlane.f32.xlu0 %v1747
        %v1811 = vpop.xlane.xlu0 %1810
        %1812 = vadd.xlane.f32.xlu0 %v1749
        %v1813 = vpop.xlane.xlu0 %1812
        %1814 = vadd.xlane.f32.xlu0 %v1751
        %v1815 = vpop.xlane.xlu0 %1814
        %1816 = vadd.xlane.f32.xlu0 %v1753
        %v1817 = vpop.xlane.xlu0 %1816
        %1818 = vadd.xlane.f32.xlu0 %v1755
        %v1819 = vpop.xlane.xlu0 %1818
        %1820 = vadd.xlane.f32.xlu0 %v1757
        %v1821 = vpop.xlane.xlu0 %1820
        %1822 = vadd.xlane.f32.xlu0 %v1759
        %v1823 = vpop.xlane.xlu0 %1822
        %1824 = vadd.xlane.f32.xlu0 %v1761
        %v1825 = vpop.xlane.xlu0 %1824
        %1826 = vadd.xlane.f32.xlu0 %v1763
        %v1827 = vpop.xlane.xlu0 %1826
        %1828 = vadd.xlane.f32.xlu0 %v1765
        %v1829 = vpop.xlane.xlu0 %1828
        %1830 = vadd.xlane.f32.xlu0 %v1767
        %v1831 = vpop.xlane.xlu0 %1830
        %1832 = vadd.xlane.f32.xlu0 %v1769
        %v1833 = vpop.xlane.xlu0 %1832
        %1834 = vadd.xlane.f32.xlu0 %v1771
        %v1835 = vpop.xlane.xlu0 %1834
        %1836 = vadd.xlane.f32.xlu0 %v1773
        %v1837 = vpop.xlane.xlu0 %1836
        %1838 = vadd.xlane.f32.xlu0 %v1775
        %v1839 = vpop.xlane.xlu0 %1838
        %1840 = vadd.xlane.f32.xlu0 %v1777
        %v1841 = vpop.xlane.xlu0 %1840
        %1842 = vadd.xlane.f32.xlu0 %v1779
        %v1843 = vpop.xlane.xlu0 %1842
        %1844 = vadd.xlane.f32.xlu0 %v1781
        %v1845 = vpop.xlane.xlu0 %1844
        %v1846 = vrcp.pop %v1783
        %v1847 = vrcp.pop %v1785
        %v1848 = vrcp.pop %v1787
        %v1849 = vrcp.pop %v1789
        %v1850 = vrcp.pop %v1791
        %v1851 = vrcp.pop %v1793
        %v1852 = vrcp.pop %v1795
        %v1853 = vrcp.pop %v1797
        %v1854 = vrcp.pop %v1799
        %v1855 = vrcp.pop %v1801
        %v1856 = vrcp.pop %v1803
        %v1857 = vrcp.pop %v1805
        %v1858 = vrcp.pop %v1807
        %v1859 = vrcp.pop %v1809
        %v1860 = vrcp.pop %v1811
        %v1861 = vrcp.pop %v1813
        %v1862 = vrcp.pop %v1815
        %v1863 = vrcp.pop %v1817
        %v1864 = vrcp.pop %v1819
        %v1865 = vrcp.pop %v1821
        %v1866 = vrcp.pop %v1823
        %v1867 = vrcp.pop %v1825
        %v1868 = vrcp.pop %v1827
        %v1869 = vrcp.pop %v1829
        %v1870 = vrcp.pop %v1831
        %v1871 = vrcp.pop %v1833
        %v1872 = vrcp.pop %v1835
        %v1873 = vrcp.pop %v1837
        %v1874 = vrcp.pop %v1839
        %v1875 = vrcp.pop %v1841
        %v1876 = vrcp.pop %v1843
        %v1877 = vrcp.pop %v1845
        %v1878 = vmul.f32 %v1719, %v1846
        %v1879 = vmul.f32 %v1721, %v1847
        %v1880 = vmul.f32 %v1723, %v1848
        %v1881 = vmul.f32 %v1725, %v1849
        %v1882 = vmul.f32 %v1727, %v1850
        %v1883 = vmul.f32 %v1729, %v1851
        %v1884 = vmul.f32 %v1731, %v1852
        %v1885 = vmul.f32 %v1733, %v1853
        %v1886 = vmul.f32 %v1735, %v1854
        %v1887 = vmul.f32 %v1737, %v1855
        %v1888 = vmul.f32 %v1739, %v1856
        %v1889 = vmul.f32 %v1741, %v1857
        %v1890 = vmul.f32 %v1743, %v1858
        %v1891 = vmul.f32 %v1745, %v1859
        %v1892 = vmul.f32 %v1747, %v1860
        %v1893 = vmul.f32 %v1749, %v1861
        %v1894 = vmul.f32 %v1751, %v1862
        %v1895 = vmul.f32 %v1753, %v1863
        %v1896 = vmul.f32 %v1755, %v1864
        %v1897 = vmul.f32 %v1757, %v1865
        %v1898 = vmul.f32 %v1759, %v1866
        %v1899 = vmul.f32 %v1761, %v1867
        %v1900 = vmul.f32 %v1763, %v1868
        %v1901 = vmul.f32 %v1765, %v1869
        %v1902 = vmul.f32 %v1767, %v1870
        %v1903 = vmul.f32 %v1769, %v1871
        %v1904 = vmul.f32 %v1771, %v1872
        %v1905 = vmul.f32 %v1773, %v1873
        %v1906 = vmul.f32 %v1775, %v1874
        %v1907 = vmul.f32 %v1777, %v1875
        %v1908 = vmul.f32 %v1779, %v1876
        %v1909 = vmul.f32 %v1781, %v1877
        %1910 = vset.pattern.permute.xlu0 1
        %1911 = vperm.xlu0 %1910, %v1078
        %v1912 = vpop.permute.xlu0 %1911
        %1914 = vset.pattern.permute.xlu0 1
        %1915 = vperm.xlu0 %1914, %v1079
        %v1916 = vpop.permute.xlu0 %1915
        %1918 = vset.pattern.permute.xlu0 1
        %1919 = vperm.xlu0 %1918, %v1080
        %v1920 = vpop.permute.xlu0 %1919
        %1922 = vset.pattern.permute.xlu0 1
        %1923 = vperm.xlu0 %1922, %v1081
        %v1924 = vpop.permute.xlu0 %1923
        %1926 = vset.pattern.permute.xlu0 1
        %1927 = vperm.xlu0 %1926, %v1082
        %v1928 = vpop.permute.xlu0 %1927
        %1930 = vset.pattern.permute.xlu0 1
        %1931 = vperm.xlu0 %1930, %v1083
        %v1932 = vpop.permute.xlu0 %1931
        %1934 = vset.pattern.permute.xlu0 1
        %1935 = vperm.xlu0 %1934, %v1084
        %v1936 = vpop.permute.xlu0 %1935
        %1938 = vset.pattern.permute.xlu0 1
        %1939 = vperm.xlu0 %1938, %v1085
        %v1940 = vpop.permute.xlu0 %1939
        %1942 = vset.pattern.permute.xlu0 1
        %1943 = vperm.xlu0 %1942, %v1086
        %v1944 = vpop.permute.xlu0 %1943
        %1946 = vset.pattern.permute.xlu0 1
        %1947 = vperm.xlu0 %1946, %v1087
        %v1948 = vpop.permute.xlu0 %1947
        %1950 = vset.pattern.permute.xlu0 1
        %1951 = vperm.xlu0 %1950, %v1088
        %v1952 = vpop.permute.xlu0 %1951
        %1954 = vset.pattern.permute.xlu0 1
        %1955 = vperm.xlu0 %1954, %v1089
        %v1956 = vpop.permute.xlu0 %1955
        %1958 = vset.pattern.permute.xlu0 1
        %1959 = vperm.xlu0 %1958, %v1090
        %v1960 = vpop.permute.xlu0 %1959
        %1962 = vset.pattern.permute.xlu0 1
        %1963 = vperm.xlu0 %1962, %v1091
        %v1964 = vpop.permute.xlu0 %1963
        %1966 = vset.pattern.permute.xlu0 1
        %1967 = vperm.xlu0 %1966, %v1092
        %v1968 = vpop.permute.xlu0 %1967
        %1970 = vset.pattern.permute.xlu0 1
        %1971 = vperm.xlu0 %1970, %v1093
        %v1972 = vpop.permute.xlu0 %1971
        %1974 = vset.pattern.permute.xlu0 1
        %1975 = vperm.xlu0 %1974, %v1094
        %v1976 = vpop.permute.xlu0 %1975
        %1978 = vset.pattern.permute.xlu0 1
        %1979 = vperm.xlu0 %1978, %v1095
        %v1980 = vpop.permute.xlu0 %1979
        %1982 = vset.pattern.permute.xlu0 1
        %1983 = vperm.xlu0 %1982, %v1096
        %v1984 = vpop.permute.xlu0 %1983
        %1986 = vset.pattern.permute.xlu0 1
        %1987 = vperm.xlu0 %1986, %v1097
        %v1988 = vpop.permute.xlu0 %1987
        %1990 = vset.pattern.permute.xlu0 1
        %1991 = vperm.xlu0 %1990, %v1098
        %v1992 = vpop.permute.xlu0 %1991
        %1994 = vset.pattern.permute.xlu0 1
        %1995 = vperm.xlu0 %1994, %v1099
        %v1996 = vpop.permute.xlu0 %1995
        %1998 = vset.pattern.permute.xlu0 1
        %1999 = vperm.xlu0 %1998, %v1100
        %v2000 = vpop.permute.xlu0 %1999
        %2002 = vset.pattern.permute.xlu0 1
        %2003 = vperm.xlu0 %2002, %v1101
        %v2004 = vpop.permute.xlu0 %2003
        %2006 = vset.pattern.permute.xlu0 1
        %2007 = vperm.xlu0 %2006, %v1102
        %v2008 = vpop.permute.xlu0 %2007
        %2010 = vset.pattern.permute.xlu0 1
        %2011 = vperm.xlu0 %2010, %v1103
        %v2012 = vpop.permute.xlu0 %2011
        %2014 = vset.pattern.permute.xlu0 1
        %2015 = vperm.xlu0 %2014, %v1104
        %v2016 = vpop.permute.xlu0 %2015
        %2018 = vset.pattern.permute.xlu0 1
        %2019 = vperm.xlu0 %2018, %v1105
        %v2020 = vpop.permute.xlu0 %2019
        %2022 = vset.pattern.permute.xlu0 1
        %2023 = vperm.xlu0 %2022, %v1106
        %v2024 = vpop.permute.xlu0 %2023
        %2026 = vset.pattern.permute.xlu0 1
        %2027 = vperm.xlu0 %2026, %v1107
        %v2028 = vpop.permute.xlu0 %2027
        %2030 = vset.pattern.permute.xlu0 1
        %2031 = vperm.xlu0 %2030, %v1108
        %v2032 = vpop.permute.xlu0 %2031
        %2034 = vset.pattern.permute.xlu0 1
        %2035 = vperm.xlu0 %2034, %v1109
        %v2036 = vpop.permute.xlu0 %2035
        %v2038 = vmul.f32 %v1912, %v1878
        %v2039 = vmul.f32 %v1916, %v1879
        %v2040 = vmul.f32 %v1920, %v1880
        %v2041 = vmul.f32 %v1924, %v1881
        %v2042 = vmul.f32 %v1928, %v1882
        %v2043 = vmul.f32 %v1932, %v1883
        %v2044 = vmul.f32 %v1936, %v1884
        %v2045 = vmul.f32 %v1940, %v1885
        %v2046 = vmul.f32 %v1944, %v1886
        %v2047 = vmul.f32 %v1948, %v1887
        %v2048 = vmul.f32 %v1952, %v1888
        %v2049 = vmul.f32 %v1956, %v1889
        %v2050 = vmul.f32 %v1960, %v1890
        %v2051 = vmul.f32 %v1964, %v1891
        %v2052 = vmul.f32 %v1968, %v1892
        %v2053 = vmul.f32 %v1972, %v1893
        %v2054 = vmul.f32 %v1976, %v1894
        %v2055 = vmul.f32 %v1980, %v1895
        %v2056 = vmul.f32 %v1984, %v1896
        %v2057 = vmul.f32 %v1988, %v1897
        %v2058 = vmul.f32 %v1992, %v1898
        %v2059 = vmul.f32 %v1996, %v1899
        %v2060 = vmul.f32 %v2000, %v1900
        %v2061 = vmul.f32 %v2004, %v1901
        %v2062 = vmul.f32 %v2008, %v1902
        %v2063 = vmul.f32 %v2012, %v1903
        %v2064 = vmul.f32 %v2016, %v1904
        %v2065 = vmul.f32 %v2020, %v1905
        %v2066 = vmul.f32 %v2024, %v1906
        %v2067 = vmul.f32 %v2028, %v1907
        %v2068 = vmul.f32 %v2032, %v1908
        %v2069 = vmul.f32 %v2036, %v1909
        %v2070 = vadd.f32 %v1590, %v2038
        %v2071 = vadd.f32 %v1591, %v2039
        %v2072 = vadd.f32 %v1592, %v2040
        %v2073 = vadd.f32 %v1593, %v2041
        %v2074 = vadd.f32 %v1594, %v2042
        %v2075 = vadd.f32 %v1595, %v2043
        %v2076 = vadd.f32 %v1596, %v2044
        %v2077 = vadd.f32 %v1597, %v2045
        %v2078 = vadd.f32 %v1598, %v2046
        %v2079 = vadd.f32 %v1599, %v2047
        %v2080 = vadd.f32 %v1600, %v2048
        %v2081 = vadd.f32 %v1601, %v2049
        %v2082 = vadd.f32 %v1602, %v2050
        %v2083 = vadd.f32 %v1603, %v2051
        %v2084 = vadd.f32 %v1604, %v2052
        %v2085 = vadd.f32 %v1605, %v2053
        %v2086 = vadd.f32 %v1606, %v2054
        %v2087 = vadd.f32 %v1607, %v2055
        %v2088 = vadd.f32 %v1608, %v2056
        %v2089 = vadd.f32 %v1609, %v2057
        %v2090 = vadd.f32 %v1610, %v2058
        %v2091 = vadd.f32 %v1611, %v2059
        %v2092 = vadd.f32 %v1612, %v2060
        %v2093 = vadd.f32 %v1613, %v2061
        %v2094 = vadd.f32 %v1614, %v2062
        %v2095 = vadd.f32 %v1615, %v2063
        %v2096 = vadd.f32 %v1616, %v2064
        %v2097 = vadd.f32 %v1617, %v2065
        %v2098 = vadd.f32 %v1618, %v2066
        %v2099 = vadd.f32 %v1619, %v2067
        %v2100 = vadd.f32 %v1620, %v2068
        %v2101 = vadd.f32 %v1621, %v2069
        %2102 = vmax.xlane.f32.xlu0 %v952
        %v2103 = vpop.xlane.xlu0 %2102
        %2104 = vmax.xlane.f32.xlu0 %v956
        %v2105 = vpop.xlane.xlu0 %2104
        %2106 = vmax.xlane.f32.xlu0 %v960
        %v2107 = vpop.xlane.xlu0 %2106
        %2108 = vmax.xlane.f32.xlu0 %v964
        %v2109 = vpop.xlane.xlu0 %2108
        %2110 = vmax.xlane.f32.xlu0 %v968
        %v2111 = vpop.xlane.xlu0 %2110
        %2112 = vmax.xlane.f32.xlu0 %v972
        %v2113 = vpop.xlane.xlu0 %2112
        %2114 = vmax.xlane.f32.xlu0 %v976
        %v2115 = vpop.xlane.xlu0 %2114
        %2116 = vmax.xlane.f32.xlu0 %v980
        %v2117 = vpop.xlane.xlu0 %2116
        %2118 = vmax.xlane.f32.xlu0 %v984
        %v2119 = vpop.xlane.xlu0 %2118
        %2120 = vmax.xlane.f32.xlu0 %v988
        %v2121 = vpop.xlane.xlu0 %2120
        %2122 = vmax.xlane.f32.xlu0 %v992
        %v2123 = vpop.xlane.xlu0 %2122
        %2124 = vmax.xlane.f32.xlu0 %v996
        %v2125 = vpop.xlane.xlu0 %2124
        %2126 = vmax.xlane.f32.xlu0 %v1000
        %v2127 = vpop.xlane.xlu0 %2126
        %2128 = vmax.xlane.f32.xlu0 %v1004
        %v2129 = vpop.xlane.xlu0 %2128
        %2130 = vmax.xlane.f32.xlu0 %v1008
        %v2131 = vpop.xlane.xlu0 %2130
        %2132 = vmax.xlane.f32.xlu0 %v1012
        %v2133 = vpop.xlane.xlu0 %2132
        %2134 = vmax.xlane.f32.xlu0 %v1016
        %v2135 = vpop.xlane.xlu0 %2134
        %2136 = vmax.xlane.f32.xlu0 %v1020
        %v2137 = vpop.xlane.xlu0 %2136
        %2138 = vmax.xlane.f32.xlu0 %v1024
        %v2139 = vpop.xlane.xlu0 %2138
        %2140 = vmax.xlane.f32.xlu0 %v1028
        %v2141 = vpop.xlane.xlu0 %2140
        %2142 = vmax.xlane.f32.xlu0 %v1032
        %v2143 = vpop.xlane.xlu0 %2142
        %2144 = vmax.xlane.f32.xlu0 %v1036
        %v2145 = vpop.xlane.xlu0 %2144
        %2146 = vmax.xlane.f32.xlu0 %v1040
        %v2147 = vpop.xlane.xlu0 %2146
        %2148 = vmax.xlane.f32.xlu0 %v1044
        %v2149 = vpop.xlane.xlu0 %2148
        %2150 = vmax.xlane.f32.xlu0 %v1048
        %v2151 = vpop.xlane.xlu0 %2150
        %2152 = vmax.xlane.f32.xlu0 %v1052
        %v2153 = vpop.xlane.xlu0 %2152
        %2154 = vmax.xlane.f32.xlu0 %v1056
        %v2155 = vpop.xlane.xlu0 %2154
        %2156 = vmax.xlane.f32.xlu0 %v1060
        %v2157 = vpop.xlane.xlu0 %2156
        %2158 = vmax.xlane.f32.xlu0 %v1064
        %v2159 = vpop.xlane.xlu0 %2158
        %2160 = vmax.xlane.f32.xlu0 %v1068
        %v2161 = vpop.xlane.xlu0 %2160
        %2162 = vmax.xlane.f32.xlu0 %v1072
        %v2163 = vpop.xlane.xlu0 %2162
        %2164 = vmax.xlane.f32.xlu0 %v1076
        %v2165 = vpop.xlane.xlu0 %2164
        %v2166 = vsub.f32 %v952, %v2103
        %v2167 = vsub.f32 %v956, %v2105
        %v2168 = vsub.f32 %v960, %v2107
        %v2169 = vsub.f32 %v964, %v2109
        %v2170 = vsub.f32 %v968, %v2111
        %v2171 = vsub.f32 %v972, %v2113
        %v2172 = vsub.f32 %v976, %v2115
        %v2173 = vsub.f32 %v980, %v2117
        %v2174 = vsub.f32 %v984, %v2119
        %v2175 = vsub.f32 %v988, %v2121
        %v2176 = vsub.f32 %v992, %v2123
        %v2177 = vsub.f32 %v996, %v2125
        %v2178 = vsub.f32 %v1000, %v2127
        %v2179 = vsub.f32 %v1004, %v2129
        %v2180 = vsub.f32 %v1008, %v2131
        %v2181 = vsub.f32 %v1012, %v2133
        %v2182 = vsub.f32 %v1016, %v2135
        %v2183 = vsub.f32 %v1020, %v2137
        %v2184 = vsub.f32 %v1024, %v2139
        %v2185 = vsub.f32 %v1028, %v2141
        %v2186 = vsub.f32 %v1032, %v2143
        %v2187 = vsub.f32 %v1036, %v2145
        %v2188 = vsub.f32 %v1040, %v2147
        %v2189 = vsub.f32 %v1044, %v2149
        %v2190 = vsub.f32 %v1048, %v2151
        %v2191 = vsub.f32 %v1052, %v2153
        %v2192 = vsub.f32 %v1056, %v2155
        %v2193 = vsub.f32 %v1060, %v2157
        %v2194 = vsub.f32 %v1064, %v2159
        %v2195 = vsub.f32 %v1068, %v2161
        %v2196 = vsub.f32 %v1072, %v2163
        %v2197 = vsub.f32 %v1076, %v2165
        %v2198 = vmul.f32 %v2166, 1.442695
        %v2199 = vpow.pop %v2198
        %v2200 = vmul.f32 %v2167, 1.442695
        %v2201 = vpow.pop %v2200
        %v2202 = vmul.f32 %v2168, 1.442695
        %v2203 = vpow.pop %v2202
        %v2204 = vmul.f32 %v2169, 1.442695
        %v2205 = vpow.pop %v2204
        %v2206 = vmul.f32 %v2170, 1.442695
        %v2207 = vpow.pop %v2206
        %v2208 = vmul.f32 %v2171, 1.442695
        %v2209 = vpow.pop %v2208
        %v2210 = vmul.f32 %v2172, 1.442695
        %v2211 = vpow.pop %v2210
        %v2212 = vmul.f32 %v2173, 1.442695
        %v2213 = vpow.pop %v2212
        %v2214 = vmul.f32 %v2174, 1.442695
        %v2215 = vpow.pop %v2214
        %v2216 = vmul.f32 %v2175, 1.442695
        %v2217 = vpow.pop %v2216
        %v2218 = vmul.f32 %v2176, 1.442695
        %v2219 = vpow.pop %v2218
        %v2220 = vmul.f32 %v2177, 1.442695
        %v2221 = vpow.pop %v2220
        %v2222 = vmul.f32 %v2178, 1.442695
        %v2223 = vpow.pop %v2222
        %v2224 = vmul.f32 %v2179, 1.442695
        %v2225 = vpow.pop %v2224
        %v2226 = vmul.f32 %v2180, 1.442695
        %v2227 = vpow.pop %v2226
        %v2228 = vmul.f32 %v2181, 1.442695
        %v2229 = vpow.pop %v2228
        %v2230 = vmul.f32 %v2182, 1.442695
        %v2231 = vpow.pop %v2230
        %v2232 = vmul.f32 %v2183, 1.442695
        %v2233 = vpow.pop %v2232
        %v2234 = vmul.f32 %v2184, 1.442695
        %v2235 = vpow.pop %v2234
        %v2236 = vmul.f32 %v2185, 1.442695
        %v2237 = vpow.pop %v2236
        %v2238 = vmul.f32 %v2186, 1.442695
        %v2239 = vpow.pop %v2238
        %v2240 = vmul.f32 %v2187, 1.442695
        %v2241 = vpow.pop %v2240
        %v2242 = vmul.f32 %v2188, 1.442695
        %v2243 = vpow.pop %v2242
        %v2244 = vmul.f32 %v2189, 1.442695
        %v2245 = vpow.pop %v2244
        %v2246 = vmul.f32 %v2190, 1.442695
        %v2247 = vpow.pop %v2246
        %v2248 = vmul.f32 %v2191, 1.442695
        %v2249 = vpow.pop %v2248
        %v2250 = vmul.f32 %v2192, 1.442695
        %v2251 = vpow.pop %v2250
        %v2252 = vmul.f32 %v2193, 1.442695
        %v2253 = vpow.pop %v2252
        %v2254 = vmul.f32 %v2194, 1.442695
        %v2255 = vpow.pop %v2254
        %v2256 = vmul.f32 %v2195, 1.442695
        %v2257 = vpow.pop %v2256
        %v2258 = vmul.f32 %v2196, 1.442695
        %v2259 = vpow.pop %v2258
        %v2260 = vmul.f32 %v2197, 1.442695
        %v2261 = vpow.pop %v2260
        %2262 = vadd.xlane.f32.xlu0 %v2199
        %v2263 = vpop.xlane.xlu0 %2262
        %2264 = vadd.xlane.f32.xlu0 %v2201
        %v2265 = vpop.xlane.xlu0 %2264
        %2266 = vadd.xlane.f32.xlu0 %v2203
        %v2267 = vpop.xlane.xlu0 %2266
        %2268 = vadd.xlane.f32.xlu0 %v2205
        %v2269 = vpop.xlane.xlu0 %2268
        %2270 = vadd.xlane.f32.xlu0 %v2207
        %v2271 = vpop.xlane.xlu0 %2270
        %2272 = vadd.xlane.f32.xlu0 %v2209
        %v2273 = vpop.xlane.xlu0 %2272
        %2274 = vadd.xlane.f32.xlu0 %v2211
        %v2275 = vpop.xlane.xlu0 %2274
        %2276 = vadd.xlane.f32.xlu0 %v2213
        %v2277 = vpop.xlane.xlu0 %2276
        %2278 = vadd.xlane.f32.xlu0 %v2215
        %v2279 = vpop.xlane.xlu0 %2278
        %2280 = vadd.xlane.f32.xlu0 %v2217
        %v2281 = vpop.xlane.xlu0 %2280
        %2282 = vadd.xlane.f32.xlu0 %v2219
        %v2283 = vpop.xlane.xlu0 %2282
        %2284 = vadd.xlane.f32.xlu0 %v2221
        %v2285 = vpop.xlane.xlu0 %2284
        %2286 = vadd.xlane.f32.xlu0 %v2223
        %v2287 = vpop.xlane.xlu0 %2286
        %2288 = vadd.xlane.f32.xlu0 %v2225
        %v2289 = vpop.xlane.xlu0 %2288
        %2290 = vadd.xlane.f32.xlu0 %v2227
        %v2291 = vpop.xlane.xlu0 %2290
        %2292 = vadd.xlane.f32.xlu0 %v2229
        %v2293 = vpop.xlane.xlu0 %2292
        %2294 = vadd.xlane.f32.xlu0 %v2231
        %v2295 = vpop.xlane.xlu0 %2294
        %2296 = vadd.xlane.f32.xlu0 %v2233
        %v2297 = vpop.xlane.xlu0 %2296
        %2298 = vadd.xlane.f32.xlu0 %v2235
        %v2299 = vpop.xlane.xlu0 %2298
        %2300 = vadd.xlane.f32.xlu0 %v2237
        %v2301 = vpop.xlane.xlu0 %2300
        %2302 = vadd.xlane.f32.xlu0 %v2239
        %v2303 = vpop.xlane.xlu0 %2302
        %2304 = vadd.xlane.f32.xlu0 %v2241
        %v2305 = vpop.xlane.xlu0 %2304
        %2306 = vadd.xlane.f32.xlu0 %v2243
        %v2307 = vpop.xlane.xlu0 %2306
        %2308 = vadd.xlane.f32.xlu0 %v2245
        %v2309 = vpop.xlane.xlu0 %2308
        %2310 = vadd.xlane.f32.xlu0 %v2247
        %v2311 = vpop.xlane.xlu0 %2310
        %2312 = vadd.xlane.f32.xlu0 %v2249
        %v2313 = vpop.xlane.xlu0 %2312
        %2314 = vadd.xlane.f32.xlu0 %v2251
        %v2315 = vpop.xlane.xlu0 %2314
        %2316 = vadd.xlane.f32.xlu0 %v2253
        %v2317 = vpop.xlane.xlu0 %2316
        %2318 = vadd.xlane.f32.xlu0 %v2255
        %v2319 = vpop.xlane.xlu0 %2318
        %2320 = vadd.xlane.f32.xlu0 %v2257
        %v2321 = vpop.xlane.xlu0 %2320
        %2322 = vadd.xlane.f32.xlu0 %v2259
        %v2323 = vpop.xlane.xlu0 %2322
        %2324 = vadd.xlane.f32.xlu0 %v2261
        %v2325 = vpop.xlane.xlu0 %2324
        %v2326 = vrcp.pop %v2263
        %v2327 = vrcp.pop %v2265
        %v2328 = vrcp.pop %v2267
        %v2329 = vrcp.pop %v2269
        %v2330 = vrcp.pop %v2271
        %v2331 = vrcp.pop %v2273
        %v2332 = vrcp.pop %v2275
        %v2333 = vrcp.pop %v2277
        %v2334 = vrcp.pop %v2279
        %v2335 = vrcp.pop %v2281
        %v2336 = vrcp.pop %v2283
        %v2337 = vrcp.pop %v2285
        %v2338 = vrcp.pop %v2287
        %v2339 = vrcp.pop %v2289
        %v2340 = vrcp.pop %v2291
        %v2341 = vrcp.pop %v2293
        %v2342 = vrcp.pop %v2295
        %v2343 = vrcp.pop %v2297
        %v2344 = vrcp.pop %v2299
        %v2345 = vrcp.pop %v2301
        %v2346 = vrcp.pop %v2303
        %v2347 = vrcp.pop %v2305
        %v2348 = vrcp.pop %v2307
        %v2349 = vrcp.pop %v2309
        %v2350 = vrcp.pop %v2311
        %v2351 = vrcp.pop %v2313
        %v2352 = vrcp.pop %v2315
        %v2353 = vrcp.pop %v2317
        %v2354 = vrcp.pop %v2319
        %v2355 = vrcp.pop %v2321
        %v2356 = vrcp.pop %v2323
        %v2357 = vrcp.pop %v2325
        %v2358 = vmul.f32 %v2199, %v2326
        %v2359 = vmul.f32 %v2201, %v2327
        %v2360 = vmul.f32 %v2203, %v2328
        %v2361 = vmul.f32 %v2205, %v2329
        %v2362 = vmul.f32 %v2207, %v2330
        %v2363 = vmul.f32 %v2209, %v2331
        %v2364 = vmul.f32 %v2211, %v2332
        %v2365 = vmul.f32 %v2213, %v2333
        %v2366 = vmul.f32 %v2215, %v2334
        %v2367 = vmul.f32 %v2217, %v2335
        %v2368 = vmul.f32 %v2219, %v2336
        %v2369 = vmul.f32 %v2221, %v2337
        %v2370 = vmul.f32 %v2223, %v2338
        %v2371 = vmul.f32 %v2225, %v2339
        %v2372 = vmul.f32 %v2227, %v2340
        %v2373 = vmul.f32 %v2229, %v2341
        %v2374 = vmul.f32 %v2231, %v2342
        %v2375 = vmul.f32 %v2233, %v2343
        %v2376 = vmul.f32 %v2235, %v2344
        %v2377 = vmul.f32 %v2237, %v2345
        %v2378 = vmul.f32 %v2239, %v2346
        %v2379 = vmul.f32 %v2241, %v2347
        %v2380 = vmul.f32 %v2243, %v2348
        %v2381 = vmul.f32 %v2245, %v2349
        %v2382 = vmul.f32 %v2247, %v2350
        %v2383 = vmul.f32 %v2249, %v2351
        %v2384 = vmul.f32 %v2251, %v2352
        %v2385 = vmul.f32 %v2253, %v2353
        %v2386 = vmul.f32 %v2255, %v2354
        %v2387 = vmul.f32 %v2257, %v2355
        %v2388 = vmul.f32 %v2259, %v2356
        %v2389 = vmul.f32 %v2261, %v2357
        %2390 = vset.pattern.permute.xlu0 2
        %2391 = vperm.xlu0 %2390, %v1078
        %v2392 = vpop.permute.xlu0 %2391
        %2394 = vset.pattern.permute.xlu0 2
        %2395 = vperm.xlu0 %2394, %v1079
        %v2396 = vpop.permute.xlu0 %2395
        %2398 = vset.pattern.permute.xlu0 2
        %2399 = vperm.xlu0 %2398, %v1080
        %v2400 = vpop.permute.xlu0 %2399
        %2402 = vset.pattern.permute.xlu0 2
        %2403 = vperm.xlu0 %2402, %v1081
        %v2404 = vpop.permute.xlu0 %2403
        %2406 = vset.pattern.permute.xlu0 2
        %2407 = vperm.xlu0 %2406, %v1082
        %v2408 = vpop.permute.xlu0 %2407
        %2410 = vset.pattern.permute.xlu0 2
        %2411 = vperm.xlu0 %2410, %v1083
        %v2412 = vpop.permute.xlu0 %2411
        %2414 = vset.pattern.permute.xlu0 2
        %2415 = vperm.xlu0 %2414, %v1084
        %v2416 = vpop.permute.xlu0 %2415
        %2418 = vset.pattern.permute.xlu0 2
        %2419 = vperm.xlu0 %2418, %v1085
        %v2420 = vpop.permute.xlu0 %2419
        %2422 = vset.pattern.permute.xlu0 2
        %2423 = vperm.xlu0 %2422, %v1086
        %v2424 = vpop.permute.xlu0 %2423
        %2426 = vset.pattern.permute.xlu0 2
        %2427 = vperm.xlu0 %2426, %v1087
        %v2428 = vpop.permute.xlu0 %2427
        %2430 = vset.pattern.permute.xlu0 2
        %2431 = vperm.xlu0 %2430, %v1088
        %v2432 = vpop.permute.xlu0 %2431
        %2434 = vset.pattern.permute.xlu0 2
        %2435 = vperm.xlu0 %2434, %v1089
        %v2436 = vpop.permute.xlu0 %2435
        %2438 = vset.pattern.permute.xlu0 2
        %2439 = vperm.xlu0 %2438, %v1090
        %v2440 = vpop.permute.xlu0 %2439
        %2442 = vset.pattern.permute.xlu0 2
        %2443 = vperm.xlu0 %2442, %v1091
        %v2444 = vpop.permute.xlu0 %2443
        %2446 = vset.pattern.permute.xlu0 2
        %2447 = vperm.xlu0 %2446, %v1092
        %v2448 = vpop.permute.xlu0 %2447
        %2450 = vset.pattern.permute.xlu0 2
        %2451 = vperm.xlu0 %2450, %v1093
        %v2452 = vpop.permute.xlu0 %2451
        %2454 = vset.pattern.permute.xlu0 2
        %2455 = vperm.xlu0 %2454, %v1094
        %v2456 = vpop.permute.xlu0 %2455
        %2458 = vset.pattern.permute.xlu0 2
        %2459 = vperm.xlu0 %2458, %v1095
        %v2460 = vpop.permute.xlu0 %2459
        %2462 = vset.pattern.permute.xlu0 2
        %2463 = vperm.xlu0 %2462, %v1096
        %v2464 = vpop.permute.xlu0 %2463
        %2466 = vset.pattern.permute.xlu0 2
        %2467 = vperm.xlu0 %2466, %v1097
        %v2468 = vpop.permute.xlu0 %2467
        %2470 = vset.pattern.permute.xlu0 2
        %2471 = vperm.xlu0 %2470, %v1098
        %v2472 = vpop.permute.xlu0 %2471
        %2474 = vset.pattern.permute.xlu0 2
        %2475 = vperm.xlu0 %2474, %v1099
        %v2476 = vpop.permute.xlu0 %2475
        %2478 = vset.pattern.permute.xlu0 2
        %2479 = vperm.xlu0 %2478, %v1100
        %v2480 = vpop.permute.xlu0 %2479
        %2482 = vset.pattern.permute.xlu0 2
        %2483 = vperm.xlu0 %2482, %v1101
        %v2484 = vpop.permute.xlu0 %2483
        %2486 = vset.pattern.permute.xlu0 2
        %2487 = vperm.xlu0 %2486, %v1102
        %v2488 = vpop.permute.xlu0 %2487
        %2490 = vset.pattern.permute.xlu0 2
        %2491 = vperm.xlu0 %2490, %v1103
        %v2492 = vpop.permute.xlu0 %2491
        %2494 = vset.pattern.permute.xlu0 2
        %2495 = vperm.xlu0 %2494, %v1104
        %v2496 = vpop.permute.xlu0 %2495
        %2498 = vset.pattern.permute.xlu0 2
        %2499 = vperm.xlu0 %2498, %v1105
        %v2500 = vpop.permute.xlu0 %2499
        %2502 = vset.pattern.permute.xlu0 2
        %2503 = vperm.xlu0 %2502, %v1106
        %v2504 = vpop.permute.xlu0 %2503
        %2506 = vset.pattern.permute.xlu0 2
        %2507 = vperm.xlu0 %2506, %v1107
        %v2508 = vpop.permute.xlu0 %2507
        %2510 = vset.pattern.permute.xlu0 2
        %2511 = vperm.xlu0 %2510, %v1108
        %v2512 = vpop.permute.xlu0 %2511
        %2514 = vset.pattern.permute.xlu0 2
        %2515 = vperm.xlu0 %2514, %v1109
        %v2516 = vpop.permute.xlu0 %2515
        %v2518 = vmul.f32 %v2392, %v2358
        %v2519 = vmul.f32 %v2396, %v2359
        %v2520 = vmul.f32 %v2400, %v2360
        %v2521 = vmul.f32 %v2404, %v2361
        %v2522 = vmul.f32 %v2408, %v2362
        %v2523 = vmul.f32 %v2412, %v2363
        %v2524 = vmul.f32 %v2416, %v2364
        %v2525 = vmul.f32 %v2420, %v2365
        %v2526 = vmul.f32 %v2424, %v2366
        %v2527 = vmul.f32 %v2428, %v2367
        %v2528 = vmul.f32 %v2432, %v2368
        %v2529 = vmul.f32 %v2436, %v2369
        %v2530 = vmul.f32 %v2440, %v2370
        %v2531 = vmul.f32 %v2444, %v2371
        %v2532 = vmul.f32 %v2448, %v2372
        %v2533 = vmul.f32 %v2452, %v2373
        %v2534 = vmul.f32 %v2456, %v2374
        %v2535 = vmul.f32 %v2460, %v2375
        %v2536 = vmul.f32 %v2464, %v2376
        %v2537 = vmul.f32 %v2468, %v2377
        %v2538 = vmul.f32 %v2472, %v2378
        %v2539 = vmul.f32 %v2476, %v2379
        %v2540 = vmul.f32 %v2480, %v2380
        %v2541 = vmul.f32 %v2484, %v2381
        %v2542 = vmul.f32 %v2488, %v2382
        %v2543 = vmul.f32 %v2492, %v2383
        %v2544 = vmul.f32 %v2496, %v2384
        %v2545 = vmul.f32 %v2500, %v2385
        %v2546 = vmul.f32 %v2504, %v2386
        %v2547 = vmul.f32 %v2508, %v2387
        %v2548 = vmul.f32 %v2512, %v2388
        %v2549 = vmul.f32 %v2516, %v2389
        %v2550 = vadd.f32 %v2070, %v2518
        %v2551 = vadd.f32 %v2071, %v2519
        %v2552 = vadd.f32 %v2072, %v2520
        %v2553 = vadd.f32 %v2073, %v2521
        %v2554 = vadd.f32 %v2074, %v2522
        %v2555 = vadd.f32 %v2075, %v2523
        %v2556 = vadd.f32 %v2076, %v2524
        %v2557 = vadd.f32 %v2077, %v2525
        %v2558 = vadd.f32 %v2078, %v2526
        %v2559 = vadd.f32 %v2079, %v2527
        %v2560 = vadd.f32 %v2080, %v2528
        %v2561 = vadd.f32 %v2081, %v2529
        %v2562 = vadd.f32 %v2082, %v2530
        %v2563 = vadd.f32 %v2083, %v2531
        %v2564 = vadd.f32 %v2084, %v2532
        %v2565 = vadd.f32 %v2085, %v2533
        %v2566 = vadd.f32 %v2086, %v2534
        %v2567 = vadd.f32 %v2087, %v2535
        %v2568 = vadd.f32 %v2088, %v2536
        %v2569 = vadd.f32 %v2089, %v2537
        %v2570 = vadd.f32 %v2090, %v2538
        %v2571 = vadd.f32 %v2091, %v2539
        %v2572 = vadd.f32 %v2092, %v2540
        %v2573 = vadd.f32 %v2093, %v2541
        %v2574 = vadd.f32 %v2094, %v2542
        %v2575 = vadd.f32 %v2095, %v2543
        %v2576 = vadd.f32 %v2096, %v2544
        %v2577 = vadd.f32 %v2097, %v2545
        %v2578 = vadd.f32 %v2098, %v2546
        %v2579 = vadd.f32 %v2099, %v2547
        %v2580 = vadd.f32 %v2100, %v2548
        %v2581 = vadd.f32 %v2101, %v2549
        %2582 = vmax.xlane.f32.xlu0 %v953
        %v2583 = vpop.xlane.xlu0 %2582
        %2584 = vmax.xlane.f32.xlu0 %v957
        %v2585 = vpop.xlane.xlu0 %2584
        %2586 = vmax.xlane.f32.xlu0 %v961
        %v2587 = vpop.xlane.xlu0 %2586
        %2588 = vmax.xlane.f32.xlu0 %v965
        %v2589 = vpop.xlane.xlu0 %2588
        %2590 = vmax.xlane.f32.xlu0 %v969
        %v2591 = vpop.xlane.xlu0 %2590
        %2592 = vmax.xlane.f32.xlu0 %v973
        %v2593 = vpop.xlane.xlu0 %2592
        %2594 = vmax.xlane.f32.xlu0 %v977
        %v2595 = vpop.xlane.xlu0 %2594
        %2596 = vmax.xlane.f32.xlu0 %v981
        %v2597 = vpop.xlane.xlu0 %2596
        %2598 = vmax.xlane.f32.xlu0 %v985
        %v2599 = vpop.xlane.xlu0 %2598
        %2600 = vmax.xlane.f32.xlu0 %v989
        %v2601 = vpop.xlane.xlu0 %2600
        %2602 = vmax.xlane.f32.xlu0 %v993
        %v2603 = vpop.xlane.xlu0 %2602
        %2604 = vmax.xlane.f32.xlu0 %v997
        %v2605 = vpop.xlane.xlu0 %2604
        %2606 = vmax.xlane.f32.xlu0 %v1001
        %v2607 = vpop.xlane.xlu0 %2606
        %2608 = vmax.xlane.f32.xlu0 %v1005
        %v2609 = vpop.xlane.xlu0 %2608
        %2610 = vmax.xlane.f32.xlu0 %v1009
        %v2611 = vpop.xlane.xlu0 %2610
        %2612 = vmax.xlane.f32.xlu0 %v1013
        %v2613 = vpop.xlane.xlu0 %2612
        %2614 = vmax.xlane.f32.xlu0 %v1017
        %v2615 = vpop.xlane.xlu0 %2614
        %2616 = vmax.xlane.f32.xlu0 %v1021
        %v2617 = vpop.xlane.xlu0 %2616
        %2618 = vmax.xlane.f32.xlu0 %v1025
        %v2619 = vpop.xlane.xlu0 %2618
        %2620 = vmax.xlane.f32.xlu0 %v1029
        %v2621 = vpop.xlane.xlu0 %2620
        %2622 = vmax.xlane.f32.xlu0 %v1033
        %v2623 = vpop.xlane.xlu0 %2622
        %2624 = vmax.xlane.f32.xlu0 %v1037
        %v2625 = vpop.xlane.xlu0 %2624
        %2626 = vmax.xlane.f32.xlu0 %v1041
        %v2627 = vpop.xlane.xlu0 %2626
        %2628 = vmax.xlane.f32.xlu0 %v1045
        %v2629 = vpop.xlane.xlu0 %2628
        %2630 = vmax.xlane.f32.xlu0 %v1049
        %v2631 = vpop.xlane.xlu0 %2630
        %2632 = vmax.xlane.f32.xlu0 %v1053
        %v2633 = vpop.xlane.xlu0 %2632
        %2634 = vmax.xlane.f32.xlu0 %v1057
        %v2635 = vpop.xlane.xlu0 %2634
        %2636 = vmax.xlane.f32.xlu0 %v1061
        %v2637 = vpop.xlane.xlu0 %2636
        %2638 = vmax.xlane.f32.xlu0 %v1065
        %v2639 = vpop.xlane.xlu0 %2638
        %2640 = vmax.xlane.f32.xlu0 %v1069
        %v2641 = vpop.xlane.xlu0 %2640
        %2642 = vmax.xlane.f32.xlu0 %v1073
        %v2643 = vpop.xlane.xlu0 %2642
        %2644 = vmax.xlane.f32.xlu0 %v1077
        %v2645 = vpop.xlane.xlu0 %2644
        %v2646 = vsub.f32 %v953, %v2583
        %v2647 = vsub.f32 %v957, %v2585
        %v2648 = vsub.f32 %v961, %v2587
        %v2649 = vsub.f32 %v965, %v2589
        %v2650 = vsub.f32 %v969, %v2591
        %v2651 = vsub.f32 %v973, %v2593
        %v2652 = vsub.f32 %v977, %v2595
        %v2653 = vsub.f32 %v981, %v2597
        %v2654 = vsub.f32 %v985, %v2599
        %v2655 = vsub.f32 %v989, %v2601
        %v2656 = vsub.f32 %v993, %v2603
        %v2657 = vsub.f32 %v997, %v2605
        %v2658 = vsub.f32 %v1001, %v2607
        %v2659 = vsub.f32 %v1005, %v2609
        %v2660 = vsub.f32 %v1009, %v2611
        %v2661 = vsub.f32 %v1013, %v2613
        %v2662 = vsub.f32 %v1017, %v2615
        %v2663 = vsub.f32 %v1021, %v2617
        %v2664 = vsub.f32 %v1025, %v2619
        %v2665 = vsub.f32 %v1029, %v2621
        %v2666 = vsub.f32 %v1033, %v2623
        %v2667 = vsub.f32 %v1037, %v2625
        %v2668 = vsub.f32 %v1041, %v2627
        %v2669 = vsub.f32 %v1045, %v2629
        %v2670 = vsub.f32 %v1049, %v2631
        %v2671 = vsub.f32 %v1053, %v2633
        %v2672 = vsub.f32 %v1057, %v2635
        %v2673 = vsub.f32 %v1061, %v2637
        %v2674 = vsub.f32 %v1065, %v2639
        %v2675 = vsub.f32 %v1069, %v2641
        %v2676 = vsub.f32 %v1073, %v2643
        %v2677 = vsub.f32 %v1077, %v2645
        %v2678 = vmul.f32 %v2646, 1.442695
        %v2679 = vpow.pop %v2678
        %v2680 = vmul.f32 %v2647, 1.442695
        %v2681 = vpow.pop %v2680
        %v2682 = vmul.f32 %v2648, 1.442695
        %v2683 = vpow.pop %v2682
        %v2684 = vmul.f32 %v2649, 1.442695
        %v2685 = vpow.pop %v2684
        %v2686 = vmul.f32 %v2650, 1.442695
        %v2687 = vpow.pop %v2686
        %v2688 = vmul.f32 %v2651, 1.442695
        %v2689 = vpow.pop %v2688
        %v2690 = vmul.f32 %v2652, 1.442695
        %v2691 = vpow.pop %v2690
        %v2692 = vmul.f32 %v2653, 1.442695
        %v2693 = vpow.pop %v2692
        %v2694 = vmul.f32 %v2654, 1.442695
        %v2695 = vpow.pop %v2694
        %v2696 = vmul.f32 %v2655, 1.442695
        %v2697 = vpow.pop %v2696
        %v2698 = vmul.f32 %v2656, 1.442695
        %v2699 = vpow.pop %v2698
        %v2700 = vmul.f32 %v2657, 1.442695
        %v2701 = vpow.pop %v2700
        %v2702 = vmul.f32 %v2658, 1.442695
        %v2703 = vpow.pop %v2702
        %v2704 = vmul.f32 %v2659, 1.442695
        %v2705 = vpow.pop %v2704
        %v2706 = vmul.f32 %v2660, 1.442695
        %v2707 = vpow.pop %v2706
        %v2708 = vmul.f32 %v2661, 1.442695
        %v2709 = vpow.pop %v2708
        %v2710 = vmul.f32 %v2662, 1.442695
        %v2711 = vpow.pop %v2710
        %v2712 = vmul.f32 %v2663, 1.442695
        %v2713 = vpow.pop %v2712
        %v2714 = vmul.f32 %v2664, 1.442695
        %v2715 = vpow.pop %v2714
        %v2716 = vmul.f32 %v2665, 1.442695
        %v2717 = vpow.pop %v2716
        %v2718 = vmul.f32 %v2666, 1.442695
        %v2719 = vpow.pop %v2718
        %v2720 = vmul.f32 %v2667, 1.442695
        %v2721 = vpow.pop %v2720
        %v2722 = vmul.f32 %v2668, 1.442695
        %v2723 = vpow.pop %v2722
        %v2724 = vmul.f32 %v2669, 1.442695
        %v2725 = vpow.pop %v2724
        %v2726 = vmul.f32 %v2670, 1.442695
        %v2727 = vpow.pop %v2726
        %v2728 = vmul.f32 %v2671, 1.442695
        %v2729 = vpow.pop %v2728
        %v2730 = vmul.f32 %v2672, 1.442695
        %v2731 = vpow.pop %v2730
        %v2732 = vmul.f32 %v2673, 1.442695
        %v2733 = vpow.pop %v2732
        %v2734 = vmul.f32 %v2674, 1.442695
        %v2735 = vpow.pop %v2734
        %v2736 = vmul.f32 %v2675, 1.442695
        %v2737 = vpow.pop %v2736
        %v2738 = vmul.f32 %v2676, 1.442695
        %v2739 = vpow.pop %v2738
        %v2740 = vmul.f32 %v2677, 1.442695
        %v2741 = vpow.pop %v2740
        %2742 = vadd.xlane.f32.xlu0 %v2679
        %v2743 = vpop.xlane.xlu0 %2742
        %2744 = vadd.xlane.f32.xlu0 %v2681
        %v2745 = vpop.xlane.xlu0 %2744
        %2746 = vadd.xlane.f32.xlu0 %v2683
        %v2747 = vpop.xlane.xlu0 %2746
        %2748 = vadd.xlane.f32.xlu0 %v2685
        %v2749 = vpop.xlane.xlu0 %2748
        %2750 = vadd.xlane.f32.xlu0 %v2687
        %v2751 = vpop.xlane.xlu0 %2750
        %2752 = vadd.xlane.f32.xlu0 %v2689
        %v2753 = vpop.xlane.xlu0 %2752
        %2754 = vadd.xlane.f32.xlu0 %v2691
        %v2755 = vpop.xlane.xlu0 %2754
        %2756 = vadd.xlane.f32.xlu0 %v2693
        %v2757 = vpop.xlane.xlu0 %2756
        %2758 = vadd.xlane.f32.xlu0 %v2695
        %v2759 = vpop.xlane.xlu0 %2758
        %2760 = vadd.xlane.f32.xlu0 %v2697
        %v2761 = vpop.xlane.xlu0 %2760
        %2762 = vadd.xlane.f32.xlu0 %v2699
        %v2763 = vpop.xlane.xlu0 %2762
        %2764 = vadd.xlane.f32.xlu0 %v2701
        %v2765 = vpop.xlane.xlu0 %2764
        %2766 = vadd.xlane.f32.xlu0 %v2703
        %v2767 = vpop.xlane.xlu0 %2766
        %2768 = vadd.xlane.f32.xlu0 %v2705
        %v2769 = vpop.xlane.xlu0 %2768
        %2770 = vadd.xlane.f32.xlu0 %v2707
        %v2771 = vpop.xlane.xlu0 %2770
        %2772 = vadd.xlane.f32.xlu0 %v2709
        %v2773 = vpop.xlane.xlu0 %2772
        %2774 = vadd.xlane.f32.xlu0 %v2711
        %v2775 = vpop.xlane.xlu0 %2774
        %2776 = vadd.xlane.f32.xlu0 %v2713
        %v2777 = vpop.xlane.xlu0 %2776
        %2778 = vadd.xlane.f32.xlu0 %v2715
        %v2779 = vpop.xlane.xlu0 %2778
        %2780 = vadd.xlane.f32.xlu0 %v2717
        %v2781 = vpop.xlane.xlu0 %2780
        %2782 = vadd.xlane.f32.xlu0 %v2719
        %v2783 = vpop.xlane.xlu0 %2782
        %2784 = vadd.xlane.f32.xlu0 %v2721
        %v2785 = vpop.xlane.xlu0 %2784
        %2786 = vadd.xlane.f32.xlu0 %v2723
        %v2787 = vpop.xlane.xlu0 %2786
        %2788 = vadd.xlane.f32.xlu0 %v2725
        %v2789 = vpop.xlane.xlu0 %2788
        %2790 = vadd.xlane.f32.xlu0 %v2727
        %v2791 = vpop.xlane.xlu0 %2790
        %2792 = vadd.xlane.f32.xlu0 %v2729
        %v2793 = vpop.xlane.xlu0 %2792
        %2794 = vadd.xlane.f32.xlu0 %v2731
        %v2795 = vpop.xlane.xlu0 %2794
        %2796 = vadd.xlane.f32.xlu0 %v2733
        %v2797 = vpop.xlane.xlu0 %2796
        %2798 = vadd.xlane.f32.xlu0 %v2735
        %v2799 = vpop.xlane.xlu0 %2798
        %2800 = vadd.xlane.f32.xlu0 %v2737
        %v2801 = vpop.xlane.xlu0 %2800
        %2802 = vadd.xlane.f32.xlu0 %v2739
        %v2803 = vpop.xlane.xlu0 %2802
        %2804 = vadd.xlane.f32.xlu0 %v2741
        %v2805 = vpop.xlane.xlu0 %2804
        %v2806 = vrcp.pop %v2743
        %v2807 = vrcp.pop %v2745
        %v2808 = vrcp.pop %v2747
        %v2809 = vrcp.pop %v2749
        %v2810 = vrcp.pop %v2751
        %v2811 = vrcp.pop %v2753
        %v2812 = vrcp.pop %v2755
        %v2813 = vrcp.pop %v2757
        %v2814 = vrcp.pop %v2759
        %v2815 = vrcp.pop %v2761
        %v2816 = vrcp.pop %v2763
        %v2817 = vrcp.pop %v2765
        %v2818 = vrcp.pop %v2767
        %v2819 = vrcp.pop %v2769
        %v2820 = vrcp.pop %v2771
        %v2821 = vrcp.pop %v2773
        %v2822 = vrcp.pop %v2775
        %v2823 = vrcp.pop %v2777
        %v2824 = vrcp.pop %v2779
        %v2825 = vrcp.pop %v2781
        %v2826 = vrcp.pop %v2783
        %v2827 = vrcp.pop %v2785
        %v2828 = vrcp.pop %v2787
        %v2829 = vrcp.pop %v2789
        %v2830 = vrcp.pop %v2791
        %v2831 = vrcp.pop %v2793
        %v2832 = vrcp.pop %v2795
        %v2833 = vrcp.pop %v2797
        %v2834 = vrcp.pop %v2799
        %v2835 = vrcp.pop %v2801
        %v2836 = vrcp.pop %v2803
        %v2837 = vrcp.pop %v2805
        %v2838 = vmul.f32 %v2679, %v2806
        %v2839 = vmul.f32 %v2681, %v2807
        %v2840 = vmul.f32 %v2683, %v2808
        %v2841 = vmul.f32 %v2685, %v2809
        %v2842 = vmul.f32 %v2687, %v2810
        %v2843 = vmul.f32 %v2689, %v2811
        %v2844 = vmul.f32 %v2691, %v2812
        %v2845 = vmul.f32 %v2693, %v2813
        %v2846 = vmul.f32 %v2695, %v2814
        %v2847 = vmul.f32 %v2697, %v2815
        %v2848 = vmul.f32 %v2699, %v2816
        %v2849 = vmul.f32 %v2701, %v2817
        %v2850 = vmul.f32 %v2703, %v2818
        %v2851 = vmul.f32 %v2705, %v2819
        %v2852 = vmul.f32 %v2707, %v2820
        %v2853 = vmul.f32 %v2709, %v2821
        %v2854 = vmul.f32 %v2711, %v2822
        %v2855 = vmul.f32 %v2713, %v2823
        %v2856 = vmul.f32 %v2715, %v2824
        %v2857 = vmul.f32 %v2717, %v2825
        %v2858 = vmul.f32 %v2719, %v2826
        %v2859 = vmul.f32 %v2721, %v2827
        %v2860 = vmul.f32 %v2723, %v2828
        %v2861 = vmul.f32 %v2725, %v2829
        %v2862 = vmul.f32 %v2727, %v2830
        %v2863 = vmul.f32 %v2729, %v2831
        %v2864 = vmul.f32 %v2731, %v2832
        %v2865 = vmul.f32 %v2733, %v2833
        %v2866 = vmul.f32 %v2735, %v2834
        %v2867 = vmul.f32 %v2737, %v2835
        %v2868 = vmul.f32 %v2739, %v2836
        %v2869 = vmul.f32 %v2741, %v2837
        %2870 = vset.pattern.permute.xlu0 3
        %2871 = vperm.xlu0 %2870, %v1078
        %v2872 = vpop.permute.xlu0 %2871
        %2874 = vset.pattern.permute.xlu0 3
        %2875 = vperm.xlu0 %2874, %v1079
        %v2876 = vpop.permute.xlu0 %2875
        %2878 = vset.pattern.permute.xlu0 3
        %2879 = vperm.xlu0 %2878, %v1080
        %v2880 = vpop.permute.xlu0 %2879
        %2882 = vset.pattern.permute.xlu0 3
        %2883 = vperm.xlu0 %2882, %v1081
        %v2884 = vpop.permute.xlu0 %2883
        %2886 = vset.pattern.permute.xlu0 3
        %2887 = vperm.xlu0 %2886, %v1082
        %v2888 = vpop.permute.xlu0 %2887
        %2890 = vset.pattern.permute.xlu0 3
        %2891 = vperm.xlu0 %2890, %v1083
        %v2892 = vpop.permute.xlu0 %2891
        %2894 = vset.pattern.permute.xlu0 3
        %2895 = vperm.xlu0 %2894, %v1084
        %v2896 = vpop.permute.xlu0 %2895
        %2898 = vset.pattern.permute.xlu0 3
        %2899 = vperm.xlu0 %2898, %v1085
        %v2900 = vpop.permute.xlu0 %2899
        %2902 = vset.pattern.permute.xlu0 3
        %2903 = vperm.xlu0 %2902, %v1086
        %v2904 = vpop.permute.xlu0 %2903
        %2906 = vset.pattern.permute.xlu0 3
        %2907 = vperm.xlu0 %2906, %v1087
        %v2908 = vpop.permute.xlu0 %2907
        %2910 = vset.pattern.permute.xlu0 3
        %2911 = vperm.xlu0 %2910, %v1088
        %v2912 = vpop.permute.xlu0 %2911
        %2914 = vset.pattern.permute.xlu0 3
        %2915 = vperm.xlu0 %2914, %v1089
        %v2916 = vpop.permute.xlu0 %2915
        %2918 = vset.pattern.permute.xlu0 3
        %2919 = vperm.xlu0 %2918, %v1090
        %v2920 = vpop.permute.xlu0 %2919
        %2922 = vset.pattern.permute.xlu0 3
        %2923 = vperm.xlu0 %2922, %v1091
        %v2924 = vpop.permute.xlu0 %2923
        %2926 = vset.pattern.permute.xlu0 3
        %2927 = vperm.xlu0 %2926, %v1092
        %v2928 = vpop.permute.xlu0 %2927
        %2930 = vset.pattern.permute.xlu0 3
        %2931 = vperm.xlu0 %2930, %v1093
        %v2932 = vpop.permute.xlu0 %2931
        %2934 = vset.pattern.permute.xlu0 3
        %2935 = vperm.xlu0 %2934, %v1094
        %v2936 = vpop.permute.xlu0 %2935
        %2938 = vset.pattern.permute.xlu0 3
        %2939 = vperm.xlu0 %2938, %v1095
        %v2940 = vpop.permute.xlu0 %2939
        %2942 = vset.pattern.permute.xlu0 3
        %2943 = vperm.xlu0 %2942, %v1096
        %v2944 = vpop.permute.xlu0 %2943
        %2946 = vset.pattern.permute.xlu0 3
        %2947 = vperm.xlu0 %2946, %v1097
        %v2948 = vpop.permute.xlu0 %2947
        %2950 = vset.pattern.permute.xlu0 3
        %2951 = vperm.xlu0 %2950, %v1098
        %v2952 = vpop.permute.xlu0 %2951
        %2954 = vset.pattern.permute.xlu0 3
        %2955 = vperm.xlu0 %2954, %v1099
        %v2956 = vpop.permute.xlu0 %2955
        %2958 = vset.pattern.permute.xlu0 3
        %2959 = vperm.xlu0 %2958, %v1100
        %v2960 = vpop.permute.xlu0 %2959
        %2962 = vset.pattern.permute.xlu0 3
        %2963 = vperm.xlu0 %2962, %v1101
        %v2964 = vpop.permute.xlu0 %2963
        %2966 = vset.pattern.permute.xlu0 3
        %2967 = vperm.xlu0 %2966, %v1102
        %v2968 = vpop.permute.xlu0 %2967
        %2970 = vset.pattern.permute.xlu0 3
        %2971 = vperm.xlu0 %2970, %v1103
        %v2972 = vpop.permute.xlu0 %2971
        %2974 = vset.pattern.permute.xlu0 3
        %2975 = vperm.xlu0 %2974, %v1104
        %v2976 = vpop.permute.xlu0 %2975
        %2978 = vset.pattern.permute.xlu0 3
        %2979 = vperm.xlu0 %2978, %v1105
        %v2980 = vpop.permute.xlu0 %2979
        %2982 = vset.pattern.permute.xlu0 3
        %2983 = vperm.xlu0 %2982, %v1106
        %v2984 = vpop.permute.xlu0 %2983
        %2986 = vset.pattern.permute.xlu0 3
        %2987 = vperm.xlu0 %2986, %v1107
        %v2988 = vpop.permute.xlu0 %2987
        %2990 = vset.pattern.permute.xlu0 3
        %2991 = vperm.xlu0 %2990, %v1108
        %v2992 = vpop.permute.xlu0 %2991
        %2994 = vset.pattern.permute.xlu0 3
        %2995 = vperm.xlu0 %2994, %v1109
        %v2996 = vpop.permute.xlu0 %2995
        %v2998 = vmul.f32 %v2872, %v2838
        %v2999 = vmul.f32 %v2876, %v2839
        %v3000 = vmul.f32 %v2880, %v2840
        %v3001 = vmul.f32 %v2884, %v2841
        %v3002 = vmul.f32 %v2888, %v2842
        %v3003 = vmul.f32 %v2892, %v2843
        %v3004 = vmul.f32 %v2896, %v2844
        %v3005 = vmul.f32 %v2900, %v2845
        %v3006 = vmul.f32 %v2904, %v2846
        %v3007 = vmul.f32 %v2908, %v2847
        %v3008 = vmul.f32 %v2912, %v2848
        %v3009 = vmul.f32 %v2916, %v2849
        %v3010 = vmul.f32 %v2920, %v2850
        %v3011 = vmul.f32 %v2924, %v2851
        %v3012 = vmul.f32 %v2928, %v2852
        %v3013 = vmul.f32 %v2932, %v2853
        %v3014 = vmul.f32 %v2936, %v2854
        %v3015 = vmul.f32 %v2940, %v2855
        %v3016 = vmul.f32 %v2944, %v2856
        %v3017 = vmul.f32 %v2948, %v2857
        %v3018 = vmul.f32 %v2952, %v2858
        %v3019 = vmul.f32 %v2956, %v2859
        %v3020 = vmul.f32 %v2960, %v2860
        %v3021 = vmul.f32 %v2964, %v2861
        %v3022 = vmul.f32 %v2968, %v2862
        %v3023 = vmul.f32 %v2972, %v2863
        %v3024 = vmul.f32 %v2976, %v2864
        %v3025 = vmul.f32 %v2980, %v2865
        %v3026 = vmul.f32 %v2984, %v2866
        %v3027 = vmul.f32 %v2988, %v2867
        %v3028 = vmul.f32 %v2992, %v2868
        %v3029 = vmul.f32 %v2996, %v2869
        %v3030 = vadd.f32 %v2550, %v2998
        %v3031 = vadd.f32 %v2551, %v2999
        %v3032 = vadd.f32 %v2552, %v3000
        %v3033 = vadd.f32 %v2553, %v3001
        %v3034 = vadd.f32 %v2554, %v3002
        %v3035 = vadd.f32 %v2555, %v3003
        %v3036 = vadd.f32 %v2556, %v3004
        %v3037 = vadd.f32 %v2557, %v3005
        %v3038 = vadd.f32 %v2558, %v3006
        %v3039 = vadd.f32 %v2559, %v3007
        %v3040 = vadd.f32 %v2560, %v3008
        %v3041 = vadd.f32 %v2561, %v3009
        %v3042 = vadd.f32 %v2562, %v3010
        %v3043 = vadd.f32 %v2563, %v3011
        %v3044 = vadd.f32 %v2564, %v3012
        %v3045 = vadd.f32 %v2565, %v3013
        %v3046 = vadd.f32 %v2566, %v3014
        %v3047 = vadd.f32 %v2567, %v3015
        %v3048 = vadd.f32 %v2568, %v3016
        %v3049 = vadd.f32 %v2569, %v3017
        %v3050 = vadd.f32 %v2570, %v3018
        %v3051 = vadd.f32 %v2571, %v3019
        %v3052 = vadd.f32 %v2572, %v3020
        %v3053 = vadd.f32 %v2573, %v3021
        %v3054 = vadd.f32 %v2574, %v3022
        %v3055 = vadd.f32 %v2575, %v3023
        %v3056 = vadd.f32 %v2576, %v3024
        %v3057 = vadd.f32 %v2577, %v3025
        %v3058 = vadd.f32 %v2578, %v3026
        %v3059 = vadd.f32 %v2579, %v3027
        %v3060 = vadd.f32 %v2580, %v3028
        %v3061 = vadd.f32 %v2581, %v3029
        %3062 = vst [vmem:[%s207] sm:$0xff] %v3030
        %3063 = vst [vmem:[%s207 + $0x8] sm:$0xff] %v3031
        %3064 = vst [vmem:[%s207 + $0x10] sm:$0xff] %v3032
        %3065 = vst [vmem:[%s207 + $0x18] sm:$0xff] %v3033
        %3066 = vst [vmem:[%s207 + $0x20] sm:$0xff] %v3034
        %3067 = vst [vmem:[%s207 + $0x28] sm:$0xff] %v3035
        %3068 = vst [vmem:[%s207 + $0x30] sm:$0xff] %v3036
        %3069 = vst [vmem:[%s207 + $0x38] sm:$0xff] %v3037
        %3070 = vst [vmem:[%s207 + $0x40] sm:$0xff] %v3038
        %3071 = vst [vmem:[%s207 + $0x48] sm:$0xff] %v3039
        %3072 = vst [vmem:[%s207 + $0x50] sm:$0xff] %v3040
        %3073 = vst [vmem:[%s207 + $0x58] sm:$0xff] %v3041
        %3074 = vst [vmem:[%s207 + $0x60] sm:$0xff] %v3042
        %3075 = vst [vmem:[%s207 + $0x68] sm:$0xff] %v3043
        %3076 = vst [vmem:[%s207 + $0x70] sm:$0xff] %v3044
        %3077 = vst [vmem:[%s207 + $0x78] sm:$0xff] %v3045
        %3078 = vst [vmem:[%s207 + $0x80] sm:$0xff] %v3046
        %3079 = vst [vmem:[%s207 + $0x88] sm:$0xff] %v3047
        %3080 = vst [vmem:[%s207 + $0x90] sm:$0xff] %v3048
        %3081 = vst [vmem:[%s207 + $0x98] sm:$0xff] %v3049
        %3082 = vst [vmem:[%s207 + $0xa0] sm:$0xff] %v3050
        %3083 = vst [vmem:[%s207 + $0xa8] sm:$0xff] %v3051
        %3084 = vst [vmem:[%s207 + $0xb0] sm:$0xff] %v3052
        %3085 = vst [vmem:[%s207 + $0xb8] sm:$0xff] %v3053
        %3086 = vst [vmem:[%s207 + $0xc0] sm:$0xff] %v3054
        %3087 = vst [vmem:[%s207 + $0xc8] sm:$0xff] %v3055
        %3088 = vst [vmem:[%s207 + $0xd0] sm:$0xff] %v3056
        %3089 = vst [vmem:[%s207 + $0xd8] sm:$0xff] %v3057
        %3090 = vst [vmem:[%s207 + $0xe0] sm:$0xff] %v3058
        %3091 = vst [vmem:[%s207 + $0xe8] sm:$0xff] %v3059
        %3092 = vst [vmem:[%s207 + $0xf0] sm:$0xff] %v3060
        %3093 = vst [vmem:[%s207 + $0xf8] sm:$0xff] %v3061
        %s3094 = sand.u32 %s120, 1
        %s3095 = scalar_lea.sflag [#allocation3], %s3094
        %s3096 = sand.u32 %s120, 1
        %s3097 = smul.addr %s3096, 256
        %s3098 = scalar_lea.vmem [#allocation2], %s3097
        // Predicated region
        $region37: #{moe_topx_forward.1} parent=35 // pred_check
          %p3099 = pneg %p130
        $region38: #{moe_topx_forward.1} parent=35 // pred_check_branch
          %3101 = sbr.rel (%p3099) target = $region40
        $region39: #{moe_topx_forward.1} parent=35 // pred_region
          %s3102 = smul.u32 32, %s18
          %s3104 = ssub.s32 4096, 4096
          %3105 = vsyncadd %s3095, %s3104
          %s3106 = smul.addr %s3102, 128
          %s3107 = scalar_lea.hbm %s4, %s3106
          %s3108 = sshll.u32 %s3098, 4
          %s3109 = int_to_ptr.vmem [resolvable:$true] %s3108
          %3114 = dma.vmem_to_hbm [thread:$0]  %s3109, 4096, %s3107, %s3095, 128, 128, 8
        $region40: #{moe_topx_forward.1} parent=35 // pred_fallthru
          _
      $region36: #{moe_topx_forward.1} parent=5 // pred_fallthru
        _
      %p3115 = scmp.le.s32.totalorder 2, %s13
      // Predicated region
      $region41: #{moe_topx_forward.1} parent=5 // pred_check
        %p3116 = pneg %p3115
      $region42: #{moe_topx_forward.1} parent=5 // pred_check_branch
        %3118 = sbr.rel (%p3116) target = $region44
      $region43: #{moe_topx_forward.1} parent=5 // pred_region
        %s3119 = ssub.s32 %s13, 2
        // Predicated region
        $region45: #{moe_topx_forward.1} parent=43 // pred_check
          %p3120 = pneg %p136
        $region46: #{moe_topx_forward.1} parent=43 // pred_check_branch
          %3122 = sbr.rel (%p3120) target = $region48
        $region47: #{moe_topx_forward.1} parent=43 // pred_region
          %s3123 = sand.u32 %s121, 1
          %s3124 = scalar_lea.sflag [#allocation3], %s3123
          %s3125 = sand.u32 %s121, 1
          %s3126 = smul.addr %s3125, 256
          %s3127 = scalar_lea.vmem [#allocation2], %s3126
          %3128 = dma.done %s3124, 4096
        $region48: #{moe_topx_forward.1} parent=43 // pred_fallthru
          _
      $region44: #{moe_topx_forward.1} parent=5 // pred_fallthru
        _
    $region6: #{moe_topx_forward.1} parent=1 // loop_footer
      %s17 = sadd.s32 1, %s13
    $region7: #{moe_topx_forward.1} parent=1 // loop_footer_branch
      %12 = sbr.rel target = $region3
    $region8: #{moe_topx_forward.1} parent=1 // loop_exit
      _
    %3129 = vsyncpa [#allocation3], 1
    %s3130 = scalar_lea.sflag [#allocation3], 1
    %3131 = vsyncpa %s3130, 1

</llo_original>
